<compile_context>
chip_gen: v7x
topology: tpu7x:2x2x1
jax: 0.10.0
libtpu: 0.0.40
codegen_flags: <defaults>
</compile_context>

<pallas_src>
import jax
import jax.numpy as jnp
from jax.experimental import pallas as pl
from jax.experimental.pallas import tpu as pltpu


def _conv_relu(x, w_ref, b_ref, pos_ref, l_cur, cdt):
    """'same' Conv1d(k=3) + ReLU on a (M, C_in) channels-last slab.

    x       : (M, C_in) f32, M = B_TILE*l_cur, samples stacked contiguously.
    w_ref   : (3*C_in, C_out) ref (compute dtype), rows ordered tap-major
              ([x_prev taps, x taps, x_next taps]).
    b_ref   : (1, C_out) f32 ref.
    pos_ref : (M, 1) int32 ref, position of each row inside its sample.
    returns : (M, C_out) f32 (post-ReLU).
    """
    m = x.shape[0]
    pos = pos_ref[...]                                        # (M, 1) int32
    # roll(+1): row l sees x[l-1];  roll(m-1) == roll(-1): row l sees x[l+1].
    # Rows that would read across a sample boundary (or wrap) are masked to 0,
    # which is exactly the zero padding of padding='same'.
    x_prev = jnp.where(pos == 0, 0.0, pltpu.roll(x, 1, axis=0))
    x_next = jnp.where(pos == l_cur - 1, 0.0, pltpu.roll(x, m - 1, axis=0))
    # Single MXU contraction over all three taps (lane concat is cheap XLU
    # work hidden under the matmul).
    x_cat = jnp.concatenate([x_prev, x, x_next], axis=1).astype(cdt)
    acc = jnp.dot(x_cat, w_ref[...], preferred_element_type=jnp.float32)
    return jnp.maximum(acc + b_ref[...], 0.0)


def _make_kernel(L, b_tile, cdt):
    L2, L4, L8 = L // 2, L // 4, L // 8
    M2, M3 = b_tile * L2, b_tile * L4

    def kernel(x_ref, pos1_ref, pos2_ref, pos3_ref,
               w1_ref, b1_ref, w2_ref, b2_ref, w3_ref, b3_ref,
               wf1_ref, bf1_ref, wf2_ref, bf2_ref,
               out_ref, s1, s2, s3, fc_buf):
        # ---- conv block 1 ------------------------------------------------
        x = x_ref[...].astype(jnp.float32)                    # (B_TILE*L, C_in)
        s1[...] = _conv_relu(x, w1_ref, b1_ref, pos1_ref, L, cdt)
        # MaxPool1d(2): pairs never straddle samples (L is even per layer).
        # NOTE: relies on stride-2 sublane reads lowering to strided loads.
        h1 = jnp.maximum(s1[pl.ds(0, M2, 2), :], s1[pl.ds(1, M2, 2), :])
        # ---- conv block 2 ------------------------------------------------
        s2[...] = _conv_relu(h1, w2_ref, b2_ref, pos2_ref, L2, cdt)
        h2 = jnp.maximum(s2[pl.ds(0, M3, 2), :], s2[pl.ds(1, M3, 2), :])
        # ---- conv block 3 (its maxpool is fused with the flatten gather) --
        s3[...] = _conv_relu(h2, w3_ref, b3_ref, pos3_ref, L4, cdt)
        # fc_buf[b, l8*32 + c] = maxpool(conv3)[sample b, position l8, channel c]
        for l8 in range(L8):                                  # L8 is small, static
            even = s3[pl.ds(2 * l8, b_tile, L4), :]
            odd = s3[pl.ds(2 * l8 + 1, b_tile, L4), :]
            fc_buf[:, l8 * 32:(l8 + 1) * 32] = jnp.maximum(even, odd)
        # ---- MLP head: (B_TILE, F)@(F, H1), then (B_TILE, H1)@(H1, out_pad)
        z = jnp.dot(fc_buf[...].astype(cdt), wf1_ref[...],
                    preferred_element_type=jnp.float32) + bf1_ref[...]
        z = jnp.maximum(z, 0.0)
        out = jnp.dot(z.astype(cdt), wf2_ref[...],
                      preferred_element_type=jnp.float32) + bf2_ref[...]
        out_ref[...] = out.astype(out_ref.dtype)              # lane-dense block

    return kernel


def cnn_forward(x_ncl, params, *, b_tile=128, compute_dtype=jnp.float32):
    """x_ncl: (B, C_in, L) float32, PyTorch NCL layout. Returns (B, out_dim) f32."""
    (W1, b1), (W2, b2), (W3, b3), (Wf1, bf1), (Wf2, bf2) = params
    B, C_in, L = x_ncl.shape
    # TODO(synk): in_dim not divisible by 8 (PyTorch floor-drops trailing elements
    # at each MaxPool) is not supported; we assert instead.
    assert L % 8 == 0 and L >= 8, "in_dim must be a multiple of 8"
    L2, L4, L8 = L // 2, L // 4, L // 8
    F = 32 * L8
    H1, out_dim = Wf1.shape[0], Wf2.shape[0]
    assert Wf1.shape == (H1, F) and Wf2.shape == (out_dim, H1)
    cdt = compute_dtype
    out_pad = -(-out_dim // 128) * 128                         # lane-dense output

    # --- batch-tile selection (b_tile is the M dim of every matmul) --------
    lane = lambda n: -(-n // 128) * 128
    csz = jnp.dtype(cdt).itemsize
    per_sample = (2 * L * lane(C_in) * csz                     # x block (dbl-buf)
                  + L * lane(8) * 4 + L2 * lane(16) * 4 + L4 * lane(32) * 4
                  + lane(F) * 4                                # fc_buf
                  + 2 * lane(out_pad) * 4                      # out block (dbl-buf)
                  + (L + L2 + L4) * lane(1) * 4)               # pos vectors
    fixed = csz * (3 * C_in * lane(8) + 24 * lane(16) + 48 * lane(32)
                   + F * lane(H1) + H1 * lane(out_pad)) + 5 * lane(max(H1, out_pad)) * 4
    budget = 32 * 2**20                                        # safe on v5e/v6e/v7x
    cap = max(8, ((max(budget - 2 * fixed, per_sample * 8) // per_sample) // 8) * 8)
    if B <= 8:
        bt = B                                                 # single tile
    else:
        # multiple of 8 (keeps the (8,128) rule) and >=2 grid steps (v7x megacore)
        bt = max(8, (min(b_tile, (B + 1) // 2, cap) // 8) * 8)
    b_pad = pl.cdiv(B, bt) * bt
    n_tiles = b_pad // bt
    M1, M2, M3 = bt * L, bt * L2, bt * L4
    est_total = 2 * fixed + bt * per_sample
    vmem_limit = int(min(56 * 2**20, max(32 * 2**20, int(1.25 * est_total))))

    # Activations: channels-last, samples stacked along the sublane axis, so a
    # grid block is simply rows [i*bt*L, (i+1)*bt*L) -- no in-kernel reshape.
    x_lc = jnp.transpose(x_ncl, (0, 2, 1)).astype(cdt)         # (B, L, C_in)
    if b_pad != B:
        x_lc = jnp.pad(x_lc, ((0, b_pad - B), (0, 0), (0, 0)))
    x_flat = x_lc.reshape(b_pad * L, C_in)

    # Per-layer "position inside sample" vectors (VMEM-resident boundary masks).
    def pos_vec(m, l_cur):
        return (jnp.arange(m, dtype=jnp.int32) % l_cur).reshape(m, 1)

    def conv_w(W):                       # torch (O, C, 3) -> kernel (3*C, O)
        O, C, K = W.shape
        return jnp.transpose(W, (2, 1, 0)).reshape(K * C, O).astype(cdt)

    def bias2d(b, width=None):           # biases stay f32 (added after the dot)
        v = b.reshape(1, -1).astype(jnp.float32)
        if width is not None and width != v.shape[1]:
            v = jnp.pad(v, ((0, 0), (0, width - v.shape[1])))
        return v

    # torch Flatten of (B, 32, L8) is channel-major (flat = c*L8 + l); the kernel
    # builds (l, c)-major rows, so permute Wf1 accordingly and pre-flatten.
    Wf1_f = jnp.transpose(Wf1.reshape(H1, 32, L8), (2, 1, 0)).reshape(F, H1)
    Wf1_f = Wf1_f.astype(cdt)
    # FC2 weight/bias zero-padded to a lane-dense output width.
    Wf2_p = jnp.pad(Wf2, ((0, out_pad - out_dim), (0, 0))).T.astype(cdt)  # (H1, out_pad)

    args = (x_flat, pos_vec(M1, L), pos_vec(M2, L2), pos_vec(M3, L4),
            conv_w(W1), bias2d(b1), conv_w(W2), bias2d(b2),
            conv_w(W3), bias2d(b3), Wf1_f, bias2d(bf1), Wf2_p, bias2d(bf2, out_pad))

    def const_spec(a):                   # whole array, VMEM-resident across grid
        nd = a.ndim
        return pl.BlockSpec(a.shape, lambda i, _nd=nd: (0,) * _nd)

    in_specs = [pl.BlockSpec((M1, C_in), lambda i: (i, 0))]
    in_specs += [const_spec(a) for a in args[1:]]

    out = pl.pallas_call(
        _make_kernel(L, bt, cdt),
        out_shape=jax.ShapeDtypeStruct((b_pad, out_pad), jnp.float32),
        grid=(n_tiles,),
        in_specs=in_specs,
        out_specs=pl.BlockSpec((bt, out_pad), lambda i: (i, 0)),
        scratch_shapes=[pltpu.VMEM((M1, 8), jnp.float32),      # conv1 pre-pool
                        pltpu.VMEM((M2, 16), jnp.float32),     # conv2 pre-pool
                        pltpu.VMEM((M3, 32), jnp.float32),     # conv3 pre-pool
                        pltpu.VMEM((bt, F), jnp.float32)],     # flattened FC input
        compiler_params=pltpu.CompilerParams(
            dimension_semantics=("parallel",),
            vmem_limit_bytes=vmem_limit),
    )(*args)
    return out[:B, :out_dim]


def cnn_ref(x_ncl, params):
    """Pure-JAX reference with exact PyTorch semantics (NCL layout)."""
    (W1, b1), (W2, b2), (W3, b3), (Wf1, bf1), (Wf2, bf2) = params

    def conv1d_same(x, W, b):            # x (B,C,L), W (O,C,3)
        L = x.shape[-1]
        xp = jnp.pad(x, ((0, 0), (0, 0), (1, 1)))
        out = b[None, :, None]
        for k in range(3):
            out = out + jnp.einsum('bcl,oc->bol', xp[:, :, k:k + L], W[:, :, k])
        return out

    def pool(x):                         # MaxPool1d(2)
        B, C, L = x.shape
        return x.reshape(B, C, L // 2, 2).max(axis=-1)

    h = pool(jax.nn.relu(conv1d_same(x_ncl, W1, b1)))
    h = pool(jax.nn.relu(conv1d_same(h, W2, b2)))
    h = pool(jax.nn.relu(conv1d_same(h, W3, b3)))
    flat = h.reshape(h.shape[0], -1)     # torch Flatten (channel-major)
    z = jax.nn.relu(flat @ Wf1.T + bf1)
    return z @ Wf2.T + bf2


def _make_params(key, C_in, L, out_dim):
    F = 32 * (L // 8)
    H1 = F // 2
    ks = jax.random.split(key, 11)

    def rnd(k, shape, scale=0.1):
        return scale * jax.random.normal(k, shape, dtype=jnp.float32)

    params = (
        (rnd(ks[0], (8, C_in, 3)),  rnd(ks[1], (8,))),        # Conv1d(C_in, 8, 3)
        (rnd(ks[2], (16, 8, 3)),    rnd(ks[3], (16,))),       # Conv1d(8, 16, 3)
        (rnd(ks[4], (32, 16, 3)),   rnd(ks[5], (32,))),       # Conv1d(16, 32, 3)
        (rnd(ks[6], (H1, F)),       rnd(ks[7], (H1,))),       # Linear(F, F//2)
        (rnd(ks[8], (out_dim, H1)), rnd(ks[9], (out_dim,))),  # Linear(F//2, out_dim)
    )
    return params, ks[10]


if __name__ == "__main__":
    # ---- case 1: in_dim=16, in_channels=4, out_dim=8, B=16 ----------------
    B, C_in, L, out_dim = 16, 4, 16, 8
    params, xkey = _make_params(jax.random.PRNGKey(0), C_in, L, out_dim)
    x = jax.random.normal(xkey, (B, C_in, L), dtype=jnp.float32)
    y_ref = cnn_ref(x, params)

    # f32 operands (tight tolerance); batch split into two grid steps of 8.
    y = jax.block_until_ready(cnn_forward(x, params, b_tile=8))
    assert y.shape == (B, out_dim)
    assert jnp.allclose(y, y_ref, atol=1e-3, rtol=1e-3), \
        float(jnp.max(jnp.abs(y - y_ref)))

    # Default (large-tile) path: auto-tiling still splits B=16 into 2 tiles.
    y_auto = jax.block_until_ready(cnn_forward(x, params))
    assert jnp.allclose(y_auto, y_ref, atol=1e-3, rtol=1e-3)

    # bf16 MXU-operand path (v6e/v7x fast path); f32 accumulation, loose tolerance.
    y_bf16 = jax.block_until_ready(
        cnn_forward(x, params, b_tile=8, compute_dtype=jnp.bfloat16))
    assert jnp.allclose(y_bf16, y_ref, atol=3e-2, rtol=3e-2), \
        float(jnp.max(jnp.abs(y_bf16 - y_ref)))

    # Ragged batch exercises the zero-padding path (B=10 -> padded to 16).
    y_rag = jax.block_until_ready(cnn_forward(x[:10], params, b_tile=8))
    assert jnp.allclose(y_rag, y_ref[:10], atol=1e-3, rtol=1e-3)

    # ---- case 2: larger spatial length (L8=4) + odd channel/out sizes ------
    B2, C2, L2, O2 = 8, 3, 32, 5
    params2, xkey2 = _make_params(jax.random.PRNGKey(1), C2, L2, O2)
    x2 = jax.random.normal(xkey2, (B2, C2, L2), dtype=jnp.float32)
    y2 = jax.block_until_ready(cnn_forward(x2, params2))
    y2_ref = cnn_ref(x2, params2)
    assert y2.shape == (B2, O2)
    assert jnp.allclose(y2, y2_ref, atol=1e-3, rtol=1e-3), \
        float(jnp.max(jnp.abs(y2 - y2_ref)))

    print("KERNEL_OK")
</pallas_src>

<mosaic_0001>
module attributes {stable_mosaic.version = 11 : i64} {
  func.func @kernel(%arg0: i32, %arg1: memref<128x4xf32, #tpu.memory_space<vmem>>, %arg2: memref<128x1xi32, #tpu.memory_space<vmem>>, %arg3: memref<64x1xi32, #tpu.memory_space<vmem>>, %arg4: memref<32x1xi32, #tpu.memory_space<vmem>>, %arg5: memref<12x8xf32, #tpu.memory_space<vmem>>, %arg6: memref<1x8xf32, #tpu.memory_space<vmem>>, %arg7: memref<24x16xf32, #tpu.memory_space<vmem>>, %arg8: memref<1x16xf32, #tpu.memory_space<vmem>>, %arg9: memref<48x32xf32, #tpu.memory_space<vmem>>, %arg10: memref<1x32xf32, #tpu.memory_space<vmem>>, %arg11: memref<64x32xf32, #tpu.memory_space<vmem>>, %arg12: memref<1x32xf32, #tpu.memory_space<vmem>>, %arg13: memref<32x128xf32, #tpu.memory_space<vmem>>, %arg14: memref<1x128xf32, #tpu.memory_space<vmem>>, %arg15: memref<8x128xf32, #tpu.memory_space<vmem>>, %arg16: memref<128x8xf32, #tpu.memory_space<vmem>>, %arg17: memref<64x16xf32, #tpu.memory_space<vmem>>, %arg18: memref<32x32xf32, #tpu.memory_space<vmem>>, %arg19: memref<8x64xf32, #tpu.memory_space<vmem>>) attributes {dimension_semantics = [#tpu.dimension_semantics<parallel>], iteration_bounds = array<i64: 2>, scalar_prefetch = 0 : i64, scratch_operands = 4 : i64, tpu.core_type = #tpu.core_type<tc>, window_params = [{transform_indices = @transform_0, window_bounds = array<i64: 128, 4>}, {pipeline_mode = #tpu.pipeline_mode<synchronous>, transform_indices = @transform_1, window_bounds = array<i64: 128, 1>}, {pipeline_mode = #tpu.pipeline_mode<synchronous>, transform_indices = @transform_2, window_bounds = array<i64: 64, 1>}, {pipeline_mode = #tpu.pipeline_mode<synchronous>, transform_indices = @transform_3, window_bounds = array<i64: 32, 1>}, {pipeline_mode = #tpu.pipeline_mode<synchronous>, transform_indices = @transform_4, window_bounds = array<i64: 12, 8>}, {pipeline_mode = #tpu.pipeline_mode<synchronous>, transform_indices = @transform_5, window_bounds = array<i64: 1, 8>}, {pipeline_mode = #tpu.pipeline_mode<synchronous>, transform_indices = @transform_6, window_bounds = array<i64: 24, 16>}, {pipeline_mode = #tpu.pipeline_mode<synchronous>, transform_indices = @transform_7, window_bounds = array<i64: 1, 16>}, {pipeline_mode = #tpu.pipeline_mode<synchronous>, transform_indices = @transform_8, window_bounds = array<i64: 48, 32>}, {pipeline_mode = #tpu.pipeline_mode<synchronous>, transform_indices = @transform_9, window_bounds = array<i64: 1, 32>}, {pipeline_mode = #tpu.pipeline_mode<synchronous>, transform_indices = @transform_10, window_bounds = array<i64: 64, 32>}, {pipeline_mode = #tpu.pipeline_mode<synchronous>, transform_indices = @transform_11, window_bounds = array<i64: 1, 32>}, {pipeline_mode = #tpu.pipeline_mode<synchronous>, transform_indices = @transform_12, window_bounds = array<i64: 32, 128>}, {pipeline_mode = #tpu.pipeline_mode<synchronous>, transform_indices = @transform_13, window_bounds = array<i64: 1, 128>}, {transform_indices = @transform_14, window_bounds = array<i64: 8, 128>}]} {
    %c0 = arith.constant 0 : index
    %c0_0 = arith.constant 0 : index
    %0 = vector.load %arg1[%c0, %c0_0] : memref<128x4xf32, #tpu.memory_space<vmem>>, vector<128x4xf32>
    %c0_1 = arith.constant 0 : index
    %c0_2 = arith.constant 0 : index
    %1 = vector.load %arg2[%c0_1, %c0_2] : memref<128x1xi32, #tpu.memory_space<vmem>>, vector<128x1xi32>
    %c0_i32 = arith.constant 0 : i32
    %2 = vector.broadcast %c0_i32 : i32 to vector<128x1xi32>
    %3 = arith.cmpi eq, %1, %2 : vector<128x1xi32>
    %c1_i32 = arith.constant 1 : i32
    %4 = tpu.dynamic_rotate %0 by %c1_i32 dim 0 : vector<128x4xf32>, i32 -> vector<128x4xf32>
    %cst = arith.constant 0.000000e+00 : f32
    %5 = vector.shape_cast %3 : vector<128x1xi1> to vector<128x1xi1>
    %6 = vector.broadcast %5 : vector<128x1xi1> to vector<128x4xi1>
    %7 = vector.broadcast %cst : f32 to vector<128x4xf32>
    %8 = arith.select %6, %7, %4 : vector<128x4xi1>, vector<128x4xf32>
    %c15_i32 = arith.constant 15 : i32
    %9 = vector.broadcast %c15_i32 : i32 to vector<128x1xi32>
    %10 = arith.cmpi eq, %1, %9 : vector<128x1xi32>
    %c127_i32 = arith.constant 127 : i32
    %11 = tpu.dynamic_rotate %0 by %c127_i32 dim 0 : vector<128x4xf32>, i32 -> vector<128x4xf32>
    %cst_3 = arith.constant 0.000000e+00 : f32
    %12 = vector.shape_cast %10 : vector<128x1xi1> to vector<128x1xi1>
    %13 = vector.broadcast %12 : vector<128x1xi1> to vector<128x4xi1>
    %14 = vector.broadcast %cst_3 : f32 to vector<128x4xf32>
    %15 = arith.select %13, %14, %11 : vector<128x4xi1>, vector<128x4xf32>
    %16 = tpu.concatenate %8, %0, %15 in 1 : vector<128x4xf32>, vector<128x4xf32>, vector<128x4xf32> -> vector<128x12xf32>
    %c0_4 = arith.constant 0 : index
    %c0_5 = arith.constant 0 : index
    %17 = vector.load %arg5[%c0_4, %c0_5] : memref<12x8xf32, #tpu.memory_space<vmem>>, vector<12x8xf32>
    %cst_6 = arith.constant dense<0.000000e+00> : vector<128x8xf32>
    %18 = tpu.matmul %16, %17, %cst_6 {dimension_numbers = #tpu.dot_dimension_numbers<[1], [0], [0], [1], [0, 0, 1, 1], [], []>} : vector<128x12xf32>, vector<12x8xf32>, vector<128x8xf32> -> vector<128x8xf32>
    %c0_7 = arith.constant 0 : index
    %c0_8 = arith.constant 0 : index
    %19 = vector.load %arg6[%c0_7, %c0_8] : memref<1x8xf32, #tpu.memory_space<vmem>>, vector<1x8xf32>
    %20 = vector.broadcast %19 : vector<1x8xf32> to vector<128x8xf32>
    %21 = arith.addf %18, %20 : vector<128x8xf32>
    %cst_9 = arith.constant 0.000000e+00 : f32
    %22 = vector.broadcast %cst_9 : f32 to vector<128x8xf32>
    %23 = arith.maximumf %21, %22 : vector<128x8xf32>
    %c0_10 = arith.constant 0 : index
    %c0_11 = arith.constant 0 : index
    %24 = vector.load %arg16[%c0_10, %c0_11] : memref<128x8xf32, #tpu.memory_space<vmem>>, vector<128x8xf32>
    tpu.vector_store %arg16[%c0_10, %c0_11], %23 {strides = array<i32>} : memref<128x8xf32, #tpu.memory_space<vmem>>, vector<128x8xf32>,
    %c0_12 = arith.constant 0 : index
    %c0_13 = arith.constant 0 : index
    %25 = tpu.strided_load %arg16[%c0_12, %c0_13] {strides = array<i32: 2, 1>} : memref<128x8xf32, #tpu.memory_space<vmem>>, vector<64x8xf32>
    %c1 = arith.constant 1 : index
    %c0_14 = arith.constant 0 : index
    %26 = tpu.strided_load %arg16[%c1, %c0_14] {strides = array<i32: 2, 1>} : memref<128x8xf32, #tpu.memory_space<vmem>>, vector<64x8xf32>
    %27 = arith.maximumf %25, %26 : vector<64x8xf32>
    %c0_15 = arith.constant 0 : index
    %c0_16 = arith.constant 0 : index
    %28 = vector.load %arg3[%c0_15, %c0_16] : memref<64x1xi32, #tpu.memory_space<vmem>>, vector<64x1xi32>
    %c0_i32_17 = arith.constant 0 : i32
    %29 = vector.broadcast %c0_i32_17 : i32 to vector<64x1xi32>
    %30 = arith.cmpi eq, %28, %29 : vector<64x1xi32>
    %c1_i32_18 = arith.constant 1 : i32
    %31 = tpu.dynamic_rotate %27 by %c1_i32_18 dim 0 : vector<64x8xf32>, i32 -> vector<64x8xf32>
    %cst_19 = arith.constant 0.000000e+00 : f32
    %32 = vector.shape_cast %30 : vector<64x1xi1> to vector<64x1xi1>
    %33 = vector.broadcast %32 : vector<64x1xi1> to vector<64x8xi1>
    %34 = vector.broadcast %cst_19 : f32 to vector<64x8xf32>
    %35 = arith.select %33, %34, %31 : vector<64x8xi1>, vector<64x8xf32>
    %c7_i32 = arith.constant 7 : i32
    %36 = vector.broadcast %c7_i32 : i32 to vector<64x1xi32>
    %37 = arith.cmpi eq, %28, %36 : vector<64x1xi32>
    %c63_i32 = arith.constant 63 : i32
    %38 = tpu.dynamic_rotate %27 by %c63_i32 dim 0 : vector<64x8xf32>, i32 -> vector<64x8xf32>
    %cst_20 = arith.constant 0.000000e+00 : f32
    %39 = vector.shape_cast %37 : vector<64x1xi1> to vector<64x1xi1>
    %40 = vector.broadcast %39 : vector<64x1xi1> to vector<64x8xi1>
    %41 = vector.broadcast %cst_20 : f32 to vector<64x8xf32>
    %42 = arith.select %40, %41, %38 : vector<64x8xi1>, vector<64x8xf32>
    %43 = tpu.concatenate %35, %27, %42 in 1 : vector<64x8xf32>, vector<64x8xf32>, vector<64x8xf32> -> vector<64x24xf32>
    %c0_21 = arith.constant 0 : index
    %c0_22 = arith.constant 0 : index
    %44 = vector.load %arg7[%c0_21, %c0_22] : memref<24x16xf32, #tpu.memory_space<vmem>>, vector<24x16xf32>
    %cst_23 = arith.constant dense<0.000000e+00> : vector<64x16xf32>
    %45 = tpu.matmul %43, %44, %cst_23 {dimension_numbers = #tpu.dot_dimension_numbers<[1], [0], [0], [1], [0, 0, 1, 1], [], []>} : vector<64x24xf32>, vector<24x16xf32>, vector<64x16xf32> -> vector<64x16xf32>
    %c0_24 = arith.constant 0 : index
    %c0_25 = arith.constant 0 : index
    %46 = vector.load %arg8[%c0_24, %c0_25] : memref<1x16xf32, #tpu.memory_space<vmem>>, vector<1x16xf32>
    %47 = vector.broadcast %46 : vector<1x16xf32> to vector<64x16xf32>
    %48 = arith.addf %45, %47 : vector<64x16xf32>
    %cst_26 = arith.constant 0.000000e+00 : f32
    %49 = vector.broadcast %cst_26 : f32 to vector<64x16xf32>
    %50 = arith.maximumf %48, %49 : vector<64x16xf32>
    %c0_27 = arith.constant 0 : index
    %c0_28 = arith.constant 0 : index
    %51 = vector.load %arg17[%c0_27, %c0_28] : memref<64x16xf32, #tpu.memory_space<vmem>>, vector<64x16xf32>
    tpu.vector_store %arg17[%c0_27, %c0_28], %50 {strides = array<i32>} : memref<64x16xf32, #tpu.memory_space<vmem>>, vector<64x16xf32>,
    %c0_29 = arith.constant 0 : index
    %c0_30 = arith.constant 0 : index
    %52 = tpu.strided_load %arg17[%c0_29, %c0_30] {strides = array<i32: 2, 1>} : memref<64x16xf32, #tpu.memory_space<vmem>>, vector<32x16xf32>
    %c1_31 = arith.constant 1 : index
    %c0_32 = arith.constant 0 : index
    %53 = tpu.strided_load %arg17[%c1_31, %c0_32] {strides = array<i32: 2, 1>} : memref<64x16xf32, #tpu.memory_space<vmem>>, vector<32x16xf32>
    %54 = arith.maximumf %52, %53 : vector<32x16xf32>
    %c0_33 = arith.constant 0 : index
    %c0_34 = arith.constant 0 : index
    %55 = vector.load %arg4[%c0_33, %c0_34] : memref<32x1xi32, #tpu.memory_space<vmem>>, vector<32x1xi32>
    %c0_i32_35 = arith.constant 0 : i32
    %56 = vector.broadcast %c0_i32_35 : i32 to vector<32x1xi32>
    %57 = arith.cmpi eq, %55, %56 : vector<32x1xi32>
    %c1_i32_36 = arith.constant 1 : i32
    %58 = tpu.dynamic_rotate %54 by %c1_i32_36 dim 0 : vector<32x16xf32>, i32 -> vector<32x16xf32>
    %cst_37 = arith.constant 0.000000e+00 : f32
    %59 = vector.shape_cast %57 : vector<32x1xi1> to vector<32x1xi1>
    %60 = vector.broadcast %59 : vector<32x1xi1> to vector<32x16xi1>
    %61 = vector.broadcast %cst_37 : f32 to vector<32x16xf32>
    %62 = arith.select %60, %61, %58 : vector<32x16xi1>, vector<32x16xf32>
    %c3_i32 = arith.constant 3 : i32
    %63 = vector.broadcast %c3_i32 : i32 to vector<32x1xi32>
    %64 = arith.cmpi eq, %55, %63 : vector<32x1xi32>
    %c31_i32 = arith.constant 31 : i32
    %65 = tpu.dynamic_rotate %54 by %c31_i32 dim 0 : vector<32x16xf32>, i32 -> vector<32x16xf32>
    %cst_38 = arith.constant 0.000000e+00 : f32
    %66 = vector.shape_cast %64 : vector<32x1xi1> to vector<32x1xi1>
    %67 = vector.broadcast %66 : vector<32x1xi1> to vector<32x16xi1>
    %68 = vector.broadcast %cst_38 : f32 to vector<32x16xf32>
    %69 = arith.select %67, %68, %65 : vector<32x16xi1>, vector<32x16xf32>
    %70 = tpu.concatenate %62, %54, %69 in 1 : vector<32x16xf32>, vector<32x16xf32>, vector<32x16xf32> -> vector<32x48xf32>
    %c0_39 = arith.constant 0 : index
    %c0_40 = arith.constant 0 : index
    %71 = vector.load %arg9[%c0_39, %c0_40] : memref<48x32xf32, #tpu.memory_space<vmem>>, vector<48x32xf32>
    %cst_41 = arith.constant dense<0.000000e+00> : vector<32x32xf32>
    %72 = tpu.matmul %70, %71, %cst_41 {dimension_numbers = #tpu.dot_dimension_numbers<[1], [0], [0], [1], [0, 0, 1, 1], [], []>} : vector<32x48xf32>, vector<48x32xf32>, vector<32x32xf32> -> vector<32x32xf32>
    %c0_42 = arith.constant 0 : index
    %c0_43 = arith.constant 0 : index
    %73 = vector.load %arg10[%c0_42, %c0_43] : memref<1x32xf32, #tpu.memory_space<vmem>>, vector<1x32xf32>
    %74 = vector.broadcast %73 : vector<1x32xf32> to vector<32x32xf32>
    %75 = arith.addf %72, %74 : vector<32x32xf32>
    %cst_44 = arith.constant 0.000000e+00 : f32
    %76 = vector.broadcast %cst_44 : f32 to vector<32x32xf32>
    %77 = arith.maximumf %75, %76 : vector<32x32xf32>
    %c0_45 = arith.constant 0 : index
    %c0_46 = arith.constant 0 : index
    %78 = vector.load %arg18[%c0_45, %c0_46] : memref<32x32xf32, #tpu.memory_space<vmem>>, vector<32x32xf32>
    tpu.vector_store %arg18[%c0_45, %c0_46], %77 {strides = array<i32>} : memref<32x32xf32, #tpu.memory_space<vmem>>, vector<32x32xf32>,
    %c0_47 = arith.constant 0 : index
    %c0_48 = arith.constant 0 : index
    %79 = tpu.strided_load %arg18[%c0_47, %c0_48] {strides = array<i32: 4, 1>} : memref<32x32xf32, #tpu.memory_space<vmem>>, vector<8x32xf32>
    %c1_49 = arith.constant 1 : index
    %c0_50 = arith.constant 0 : index
    %80 = tpu.strided_load %arg18[%c1_49, %c0_50] {strides = array<i32: 4, 1>} : memref<32x32xf32, #tpu.memory_space<vmem>>, vector<8x32xf32>
    %81 = arith.maximumf %79, %80 : vector<8x32xf32>
    %c0_51 = arith.constant 0 : index
    %c0_52 = arith.constant 0 : index
    %82 = vector.load %arg19[%c0_51, %c0_52] : memref<8x64xf32, #tpu.memory_space<vmem>>, vector<8x32xf32>
    tpu.vector_store %arg19[%c0_51, %c0_52], %81 {strides = array<i32>} : memref<8x64xf32, #tpu.memory_space<vmem>>, vector<8x32xf32>,
    %c2 = arith.constant 2 : index
    %c0_53 = arith.constant 0 : index
    %83 = tpu.strided_load %arg18[%c2, %c0_53] {strides = array<i32: 4, 1>} : memref<32x32xf32, #tpu.memory_space<vmem>>, vector<8x32xf32>
    %c3 = arith.constant 3 : index
    %c0_54 = arith.constant 0 : index
    %84 = tpu.strided_load %arg18[%c3, %c0_54] {strides = array<i32: 4, 1>} : memref<32x32xf32, #tpu.memory_space<vmem>>, vector<8x32xf32>
    %85 = arith.maximumf %83, %84 : vector<8x32xf32>
    %c0_55 = arith.constant 0 : index
    %c32 = arith.constant 32 : index
    %86 = vector.load %arg19[%c0_55, %c32] : memref<8x64xf32, #tpu.memory_space<vmem>>, vector<8x32xf32>
    tpu.vector_store %arg19[%c0_55, %c32], %85 {strides = array<i32>} : memref<8x64xf32, #tpu.memory_space<vmem>>, vector<8x32xf32>,
    %c0_56 = arith.constant 0 : index
    %c0_57 = arith.constant 0 : index
    %87 = vector.load %arg19[%c0_56, %c0_57] : memref<8x64xf32, #tpu.memory_space<vmem>>, vector<8x64xf32>
    %c0_58 = arith.constant 0 : index
    %c0_59 = arith.constant 0 : index
    %88 = vector.load %arg11[%c0_58, %c0_59] : memref<64x32xf32, #tpu.memory_space<vmem>>, vector<64x32xf32>
    %cst_60 = arith.constant dense<0.000000e+00> : vector<8x32xf32>
    %89 = tpu.matmul %87, %88, %cst_60 {dimension_numbers = #tpu.dot_dimension_numbers<[1], [0], [0], [1], [0, 0, 1, 1], [], []>} : vector<8x64xf32>, vector<64x32xf32>, vector<8x32xf32> -> vector<8x32xf32>
    %c0_61 = arith.constant 0 : index
    %c0_62 = arith.constant 0 : index
    %90 = vector.load %arg12[%c0_61, %c0_62] : memref<1x32xf32, #tpu.memory_space<vmem>>, vector<1x32xf32>
    %91 = vector.broadcast %90 : vector<1x32xf32> to vector<8x32xf32>
    %92 = arith.addf %89, %91 : vector<8x32xf32>
    %cst_63 = arith.constant 0.000000e+00 : f32
    %93 = vector.broadcast %cst_63 : f32 to vector<8x32xf32>
    %94 = arith.maximumf %92, %93 : vector<8x32xf32>
    %c0_64 = arith.constant 0 : index
    %c0_65 = arith.constant 0 : index
    %95 = vector.load %arg13[%c0_64, %c0_65] : memref<32x128xf32, #tpu.memory_space<vmem>>, vector<32x128xf32>
    %cst_66 = arith.constant dense<0.000000e+00> : vector<8x128xf32>
    %96 = tpu.matmul %94, %95, %cst_66 {dimension_numbers = #tpu.dot_dimension_numbers<[1], [0], [0], [1], [0, 0, 1, 1], [], []>} : vector<8x32xf32>, vector<32x128xf32>, vector<8x128xf32> -> vector<8x128xf32>
    %c0_67 = arith.constant 0 : index
    %c0_68 = arith.constant 0 : index
    %97 = vector.load %arg14[%c0_67, %c0_68] : memref<1x128xf32, #tpu.memory_space<vmem>>, vector<1x128xf32>
    %98 = vector.broadcast %97 : vector<1x128xf32> to vector<8x128xf32>
    %99 = arith.addf %96, %98 : vector<8x128xf32>
    %c0_69 = arith.constant 0 : index
    %c0_70 = arith.constant 0 : index
    %100 = vector.load %arg15[%c0_69, %c0_70] : memref<8x128xf32, #tpu.memory_space<vmem>>, vector<8x128xf32>
    tpu.vector_store %arg15[%c0_69, %c0_70], %99 {strides = array<i32>} : memref<8x128xf32, #tpu.memory_space<vmem>>, vector<8x128xf32>,
    return
  }
  func.func @transform_0(%arg0: i32) -> (i32, i32) {
    %c0_i32 = arith.constant 0 : i32
    %c0_i32_0 = arith.constant 0 : i32
    return %arg0, %c0_i32 : i32, i32
  }
  func.func @transform_1(%arg0: i32) -> (i32, i32) {
    %c0_i32 = arith.constant 0 : i32
    %c0_i32_0 = arith.constant 0 : i32
    %c0_i32_1 = arith.constant 0 : i32
    return %c0_i32, %c0_i32_0 : i32, i32
  }
  func.func @transform_2(%arg0: i32) -> (i32, i32) {
    %c0_i32 = arith.constant 0 : i32
    %c0_i32_0 = arith.constant 0 : i32
    %c0_i32_1 = arith.constant 0 : i32
    return %c0_i32, %c0_i32_0 : i32, i32
  }
  func.func @transform_3(%arg0: i32) -> (i32, i32) {
    %c0_i32 = arith.constant 0 : i32
    %c0_i32_0 = arith.constant 0 : i32
    %c0_i32_1 = arith.constant 0 : i32
    return %c0_i32, %c0_i32_0 : i32, i32
  }
  func.func @transform_4(%arg0: i32) -> (i32, i32) {
    %c0_i32 = arith.constant 0 : i32
    %c0_i32_0 = arith.constant 0 : i32
    %c0_i32_1 = arith.constant 0 : i32
    return %c0_i32, %c0_i32_0 : i32, i32
  }
  func.func @transform_5(%arg0: i32) -> (i32, i32) {
    %c0_i32 = arith.constant 0 : i32
    %c0_i32_0 = arith.constant 0 : i32
    %c0_i32_1 = arith.constant 0 : i32
    return %c0_i32, %c0_i32_0 : i32, i32
  }
  func.func @transform_6(%arg0: i32) -> (i32, i32) {
    %c0_i32 = arith.constant 0 : i32
    %c0_i32_0 = arith.constant 0 : i32
    %c0_i32_1 = arith.constant 0 : i32
    return %c0_i32, %c0_i32_0 : i32, i32
  }
  func.func @transform_7(%arg0: i32) -> (i32, i32) {
    %c0_i32 = arith.constant 0 : i32
    %c0_i32_0 = arith.constant 0 : i32
    %c0_i32_1 = arith.constant 0 : i32
    return %c0_i32, %c0_i32_0 : i32, i32
  }
  func.func @transform_8(%arg0: i32) -> (i32, i32) {
    %c0_i32 = arith.constant 0 : i32
    %c0_i32_0 = arith.constant 0 : i32
    %c0_i32_1 = arith.constant 0 : i32
    return %c0_i32, %c0_i32_0 : i32, i32
  }
  func.func @transform_9(%arg0: i32) -> (i32, i32) {
    %c0_i32 = arith.constant 0 : i32
    %c0_i32_0 = arith.constant 0 : i32
    %c0_i32_1 = arith.constant 0 : i32
    return %c0_i32, %c0_i32_0 : i32, i32
  }
  func.func @transform_10(%arg0: i32) -> (i32, i32) {
    %c0_i32 = arith.constant 0 : i32
    %c0_i32_0 = arith.constant 0 : i32
    %c0_i32_1 = arith.constant 0 : i32
    return %c0_i32, %c0_i32_0 : i32, i32
  }
  func.func @transform_11(%arg0: i32) -> (i32, i32) {
    %c0_i32 = arith.constant 0 : i32
    %c0_i32_0 = arith.constant 0 : i32
    %c0_i32_1 = arith.constant 0 : i32
    return %c0_i32, %c0_i32_0 : i32, i32
  }
  func.func @transform_12(%arg0: i32) -> (i32, i32) {
    %c0_i32 = arith.constant 0 : i32
    %c0_i32_0 = arith.constant 0 : i32
    %c0_i32_1 = arith.constant 0 : i32
    return %c0_i32, %c0_i32_0 : i32, i32
  }
  func.func @transform_13(%arg0: i32) -> (i32, i32) {
    %c0_i32 = arith.constant 0 : i32
    %c0_i32_0 = arith.constant 0 : i32
    %c0_i32_1 = arith.constant 0 : i32
    return %c0_i32, %c0_i32_0 : i32, i32
  }
  func.func @transform_14(%arg0: i32) -> (i32, i32) {
    %c0_i32 = arith.constant 0 : i32
    %c0_i32_0 = arith.constant 0 : i32
    return %arg0, %c0_i32 : i32, i32
  }
}

</mosaic_0001>

<llo_original>
// kernel: tpu_custom_call.1
$region0: #{tpu_custom_call.1}
  #allocation0 [shape = 'u32[]', space=smem, size = 0x4, offset = 0x4, fixed_abs, tag = 'smem constant byte address 0x4 - core index']
  #allocation1 [shape = 'u32[144,128]{1,0:T(1,128)}', space=vmem, size = 0x12000, scoped, tag = 'internal scratch']
  #allocation2 [shape = 'f32[128,8]{1,0:T(8,128)}', space=vmem, size = 0x10000, scoped, tag = 'scratch operand']
  #allocation3 [shape = 'f32[64,16]{1,0:T(8,128)}', space=vmem, size = 0x8000, scoped, tag = 'scratch operand']
  #allocation4 [shape = 'f32[32,32]{1,0:T(8,128)}', space=vmem, size = 0x4000, scoped, tag = 'scratch operand']
  #allocation5 [shape = 'f32[8,64]{1,0:T(8,128)}', space=vmem, size = 0x1000, scoped, tag = 'scratch operand']
  %s0 = inlined_call_operand.vmem [shape: f32[256,4], index: 0, kind: input, shape index: {}]
  %s1 = inlined_call_operand.vmem [shape: s32[128,1], index: 1, kind: input, shape index: {}]
  %s2 = inlined_call_operand.vmem [shape: s32[64,1], index: 2, kind: input, shape index: {}]
  %s3 = inlined_call_operand.vmem [shape: s32[32,1], index: 3, kind: input, shape index: {}]
  %s4 = inlined_call_operand.vmem [shape: f32[12,8], index: 4, kind: input, shape index: {}]
  %s5 = inlined_call_operand.vmem [shape: f32[1,8], index: 5, kind: input, shape index: {}]
  %s6 = inlined_call_operand.vmem [shape: f32[24,16], index: 6, kind: input, shape index: {}]
  %s7 = inlined_call_operand.vmem [shape: f32[1,16], index: 7, kind: input, shape index: {}]
  %s8 = inlined_call_operand.vmem [shape: f32[48,32], index: 8, kind: input, shape index: {}]
  %s9 = inlined_call_operand.vmem [shape: f32[1,32], index: 9, kind: input, shape index: {}]
  %s10 = inlined_call_operand.vmem [shape: f32[64,32], index: 10, kind: input, shape index: {}]
  %s11 = inlined_call_operand.vmem [shape: f32[1,32], index: 11, kind: input, shape index: {}]
  %s12 = inlined_call_operand.vmem [shape: f32[32,128], index: 12, kind: input, shape index: {}]
  %s13 = inlined_call_operand.vmem [shape: f32[1,128], index: 13, kind: input, shape index: {}]
  %s14 = inlined_call_operand.hbm [shape: f32[16,128], index: 14, kind: output, shape index: {}]
  %s15 = sld [smem:[#allocation0]]
  $region89: #{tpu_custom_call.1} parent=0
    _
  %s17 = ssub.s32 1, %s15
  %s18 = scalar_select 0, %s17, %s15
  $region1: #{tpu_custom_call.1} parent=0
    #allocation6 [shape = 'u8[8192]{0}', space=vmem, size = 0x2000, scoped, tag = 'output window, operand 0']
    #allocation7 [shape = 's32[2]{0}', space=sflag, size = 0x8, scoped, tag = 'scoped memory for tpu_custom_call.1']
    %19 = vsyncpa [#allocation7], 0
    %s20 = scalar_lea.sflag [#allocation7], 1
    %21 = vsyncpa %s20, 0
    loop: start=0, step=1, limit=4
    $region2: #{tpu_custom_call.1} parent=1 // loop_pre_header
      _
    $region3: #{tpu_custom_call.1} parent=1 // loop_header
      %s23 = sphi 0, %s27
      %p24 = scmp.ge.s32.totalorder %s23, 4
      %s33 = sphi 0, %s35
      %s36 = sphi 0, %s33
      %s37 = sphi 0, %s36
      %s53 = sphi 0, %s37
      %s57 = sphi 0, %s57
      %s59 = sphi 0, %s57
      %s60 = sphi 0, %s59
      %s74 = sphi 0, %s60
      %s78 = sphi 0, %s78
      %s80 = sphi 0, %s78
      %s81 = sphi 0, %s80
      %s95 = sphi 0, %s81
      %s99 = sphi 0, %s99
      %s101 = sphi 0, %s99
      %s102 = sphi 0, %s101
      %s116 = sphi 0, %s102
      %s120 = sphi 0, %s120
      %s122 = sphi 0, %s120
      %s123 = sphi 0, %s122
      %s137 = sphi 0, %s123
      %s141 = sphi 0, %s141
      %s143 = sphi 0, %s141
      %s144 = sphi 0, %s143
      %s158 = sphi 0, %s144
      %s162 = sphi 0, %s162
      %s164 = sphi 0, %s162
      %s165 = sphi 0, %s164
      %s179 = sphi 0, %s165
      %s183 = sphi 0, %s183
      %s185 = sphi 0, %s183
      %s186 = sphi 0, %s185
      %s200 = sphi 0, %s186
      %s204 = sphi 0, %s204
      %s206 = sphi 0, %s204
      %s207 = sphi 0, %s206
      %s221 = sphi 0, %s207
      %s225 = sphi 0, %s225
      %s227 = sphi 0, %s225
      %s228 = sphi 0, %s227
      %s242 = sphi 0, %s228
      %s246 = sphi 0, %s246
      %s248 = sphi 0, %s246
      %s249 = sphi 0, %s248
      %s263 = sphi 0, %s249
      %s267 = sphi 0, %s267
      %s269 = sphi 0, %s267
      %s270 = sphi 0, %s269
      %s284 = sphi 0, %s270
      %s288 = sphi 0, %s288
      %s290 = sphi 0, %s288
      %s291 = sphi 0, %s290
      %s305 = sphi 0, %s291
      %s309 = sphi 0, %s309
      %s311 = sphi 0, %s309
      %s312 = sphi 0, %s311
      %s326 = sphi 0, %s312
      %s332 = sphi 0, %s334
      %s335 = sphi 0, %s332
      %s336 = sphi 0, %s335
      %s352 = sphi 0, %s336
    $region4: #{tpu_custom_call.1} parent=1 // loop_header_branch
      %26 = sbr.rel (%p24) target = $region8
    $region5: #{tpu_custom_call.1} parent=1 // loop_body
      %s28 = ssub.s32 %s23, 1
      %s29 = ssub.s32 %s23, 2
      %s30 = sadd.s32 %s23, 1
      %s31 = ssub.s32 %s23, %s30
      %p32 = scmp.eq.s32.totalorder %s31, 0
      %s34 = sadd.s32 %s33, 1
      %s35 = scalar_select %p32, %s33, %s34
      %p38 = pneg %p32
      %p39 = scmp.eq.s32.totalorder %s23, 1
      %p40 = por %p38, %p39
      %p41 = scmp.ne.s32.totalorder %s33, %s36
      %p42 = scmp.eq.s32.totalorder %s23, 0
      %p43 = por %p41, %p42
      %p44 = scmp.ne.s32.totalorder %s33, %s36
      %p45 = scmp.eq.s32.totalorder %s28, 1
      %p46 = por %p44, %p45
      %p47 = scmp.ne.s32.totalorder %s36, %s37
      %p48 = scmp.eq.s32.totalorder %s28, 0
      %p49 = por %p47, %p48
      %p50 = scmp.ne.s32.totalorder %s36, %s37
      %p51 = scmp.eq.s32.totalorder %s29, 1
      %p52 = por %p50, %p51
      %p54 = scmp.ne.s32.totalorder %s37, %s53
      %p55 = scmp.eq.s32.totalorder %s29, 0
      %p56 = por %p54, %p55
      %s58 = sadd.s32 %s57, 1
      %p61 = scmp.eq.s32.totalorder %s23, 1
      %p62 = scmp.ne.s32.totalorder %s57, %s59
      %p63 = scmp.eq.s32.totalorder %s23, 0
      %p64 = por %p62, %p63
      %p65 = scmp.ne.s32.totalorder %s57, %s59
      %p66 = scmp.eq.s32.totalorder %s28, 1
      %p67 = por %p65, %p66
      %p68 = scmp.ne.s32.totalorder %s59, %s60
      %p69 = scmp.eq.s32.totalorder %s28, 0
      %p70 = por %p68, %p69
      %p71 = scmp.ne.s32.totalorder %s59, %s60
      %p72 = scmp.eq.s32.totalorder %s29, 1
      %p73 = por %p71, %p72
      %p75 = scmp.ne.s32.totalorder %s60, %s74
      %p76 = scmp.eq.s32.totalorder %s29, 0
      %p77 = por %p75, %p76
      %s79 = sadd.s32 %s78, 1
      %p82 = scmp.eq.s32.totalorder %s23, 1
      %p83 = scmp.ne.s32.totalorder %s78, %s80
      %p84 = scmp.eq.s32.totalorder %s23, 0
      %p85 = por %p83, %p84
      %p86 = scmp.ne.s32.totalorder %s78, %s80
      %p87 = scmp.eq.s32.totalorder %s28, 1
      %p88 = por %p86, %p87
      %p89 = scmp.ne.s32.totalorder %s80, %s81
      %p90 = scmp.eq.s32.totalorder %s28, 0
      %p91 = por %p89, %p90
      %p92 = scmp.ne.s32.totalorder %s80, %s81
      %p93 = scmp.eq.s32.totalorder %s29, 1
      %p94 = por %p92, %p93
      %p96 = scmp.ne.s32.totalorder %s81, %s95
      %p97 = scmp.eq.s32.totalorder %s29, 0
      %p98 = por %p96, %p97
      %s100 = sadd.s32 %s99, 1
      %p103 = scmp.eq.s32.totalorder %s23, 1
      %p104 = scmp.ne.s32.totalorder %s99, %s101
      %p105 = scmp.eq.s32.totalorder %s23, 0
      %p106 = por %p104, %p105
      %p107 = scmp.ne.s32.totalorder %s99, %s101
      %p108 = scmp.eq.s32.totalorder %s28, 1
      %p109 = por %p107, %p108
      %p110 = scmp.ne.s32.totalorder %s101, %s102
      %p111 = scmp.eq.s32.totalorder %s28, 0
      %p112 = por %p110, %p111
      %p113 = scmp.ne.s32.totalorder %s101, %s102
      %p114 = scmp.eq.s32.totalorder %s29, 1
      %p115 = por %p113, %p114
      %p117 = scmp.ne.s32.totalorder %s102, %s116
      %p118 = scmp.eq.s32.totalorder %s29, 0
      %p119 = por %p117, %p118
      %s121 = sadd.s32 %s120, 1
      %p124 = scmp.eq.s32.totalorder %s23, 1
      %p125 = scmp.ne.s32.totalorder %s120, %s122
      %p126 = scmp.eq.s32.totalorder %s23, 0
      %p127 = por %p125, %p126
      %p128 = scmp.ne.s32.totalorder %s120, %s122
      %p129 = scmp.eq.s32.totalorder %s28, 1
      %p130 = por %p128, %p129
      %p131 = scmp.ne.s32.totalorder %s122, %s123
      %p132 = scmp.eq.s32.totalorder %s28, 0
      %p133 = por %p131, %p132
      %p134 = scmp.ne.s32.totalorder %s122, %s123
      %p135 = scmp.eq.s32.totalorder %s29, 1
      %p136 = por %p134, %p135
      %p138 = scmp.ne.s32.totalorder %s123, %s137
      %p139 = scmp.eq.s32.totalorder %s29, 0
      %p140 = por %p138, %p139
      %s142 = sadd.s32 %s141, 1
      %p145 = scmp.eq.s32.totalorder %s23, 1
      %p146 = scmp.ne.s32.totalorder %s141, %s143
      %p147 = scmp.eq.s32.totalorder %s23, 0
      %p148 = por %p146, %p147
      %p149 = scmp.ne.s32.totalorder %s141, %s143
      %p150 = scmp.eq.s32.totalorder %s28, 1
      %p151 = por %p149, %p150
      %p152 = scmp.ne.s32.totalorder %s143, %s144
      %p153 = scmp.eq.s32.totalorder %s28, 0
      %p154 = por %p152, %p153
      %p155 = scmp.ne.s32.totalorder %s143, %s144
      %p156 = scmp.eq.s32.totalorder %s29, 1
      %p157 = por %p155, %p156
      %p159 = scmp.ne.s32.totalorder %s144, %s158
      %p160 = scmp.eq.s32.totalorder %s29, 0
      %p161 = por %p159, %p160
      %s163 = sadd.s32 %s162, 1
      %p166 = scmp.eq.s32.totalorder %s23, 1
      %p167 = scmp.ne.s32.totalorder %s162, %s164
      %p168 = scmp.eq.s32.totalorder %s23, 0
      %p169 = por %p167, %p168
      %p170 = scmp.ne.s32.totalorder %s162, %s164
      %p171 = scmp.eq.s32.totalorder %s28, 1
      %p172 = por %p170, %p171
      %p173 = scmp.ne.s32.totalorder %s164, %s165
      %p174 = scmp.eq.s32.totalorder %s28, 0
      %p175 = por %p173, %p174
      %p176 = scmp.ne.s32.totalorder %s164, %s165
      %p177 = scmp.eq.s32.totalorder %s29, 1
      %p178 = por %p176, %p177
      %p180 = scmp.ne.s32.totalorder %s165, %s179
      %p181 = scmp.eq.s32.totalorder %s29, 0
      %p182 = por %p180, %p181
      %s184 = sadd.s32 %s183, 1
      %p187 = scmp.eq.s32.totalorder %s23, 1
      %p188 = scmp.ne.s32.totalorder %s183, %s185
      %p189 = scmp.eq.s32.totalorder %s23, 0
      %p190 = por %p188, %p189
      %p191 = scmp.ne.s32.totalorder %s183, %s185
      %p192 = scmp.eq.s32.totalorder %s28, 1
      %p193 = por %p191, %p192
      %p194 = scmp.ne.s32.totalorder %s185, %s186
      %p195 = scmp.eq.s32.totalorder %s28, 0
      %p196 = por %p194, %p195
      %p197 = scmp.ne.s32.totalorder %s185, %s186
      %p198 = scmp.eq.s32.totalorder %s29, 1
      %p199 = por %p197, %p198
      %p201 = scmp.ne.s32.totalorder %s186, %s200
      %p202 = scmp.eq.s32.totalorder %s29, 0
      %p203 = por %p201, %p202
      %s205 = sadd.s32 %s204, 1
      %p208 = scmp.eq.s32.totalorder %s23, 1
      %p209 = scmp.ne.s32.totalorder %s204, %s206
      %p210 = scmp.eq.s32.totalorder %s23, 0
      %p211 = por %p209, %p210
      %p212 = scmp.ne.s32.totalorder %s204, %s206
      %p213 = scmp.eq.s32.totalorder %s28, 1
      %p214 = por %p212, %p213
      %p215 = scmp.ne.s32.totalorder %s206, %s207
      %p216 = scmp.eq.s32.totalorder %s28, 0
      %p217 = por %p215, %p216
      %p218 = scmp.ne.s32.totalorder %s206, %s207
      %p219 = scmp.eq.s32.totalorder %s29, 1
      %p220 = por %p218, %p219
      %p222 = scmp.ne.s32.totalorder %s207, %s221
      %p223 = scmp.eq.s32.totalorder %s29, 0
      %p224 = por %p222, %p223
      %s226 = sadd.s32 %s225, 1
      %p229 = scmp.eq.s32.totalorder %s23, 1
      %p230 = scmp.ne.s32.totalorder %s225, %s227
      %p231 = scmp.eq.s32.totalorder %s23, 0
      %p232 = por %p230, %p231
      %p233 = scmp.ne.s32.totalorder %s225, %s227
      %p234 = scmp.eq.s32.totalorder %s28, 1
      %p235 = por %p233, %p234
      %p236 = scmp.ne.s32.totalorder %s227, %s228
      %p237 = scmp.eq.s32.totalorder %s28, 0
      %p238 = por %p236, %p237
      %p239 = scmp.ne.s32.totalorder %s227, %s228
      %p240 = scmp.eq.s32.totalorder %s29, 1
      %p241 = por %p239, %p240
      %p243 = scmp.ne.s32.totalorder %s228, %s242
      %p244 = scmp.eq.s32.totalorder %s29, 0
      %p245 = por %p243, %p244
      %s247 = sadd.s32 %s246, 1
      %p250 = scmp.eq.s32.totalorder %s23, 1
      %p251 = scmp.ne.s32.totalorder %s246, %s248
      %p252 = scmp.eq.s32.totalorder %s23, 0
      %p253 = por %p251, %p252
      %p254 = scmp.ne.s32.totalorder %s246, %s248
      %p255 = scmp.eq.s32.totalorder %s28, 1
      %p256 = por %p254, %p255
      %p257 = scmp.ne.s32.totalorder %s248, %s249
      %p258 = scmp.eq.s32.totalorder %s28, 0
      %p259 = por %p257, %p258
      %p260 = scmp.ne.s32.totalorder %s248, %s249
      %p261 = scmp.eq.s32.totalorder %s29, 1
      %p262 = por %p260, %p261
      %p264 = scmp.ne.s32.totalorder %s249, %s263
      %p265 = scmp.eq.s32.totalorder %s29, 0
      %p266 = por %p264, %p265
      %s268 = sadd.s32 %s267, 1
      %p271 = scmp.eq.s32.totalorder %s23, 1
      %p272 = scmp.ne.s32.totalorder %s267, %s269
      %p273 = scmp.eq.s32.totalorder %s23, 0
      %p274 = por %p272, %p273
      %p275 = scmp.ne.s32.totalorder %s267, %s269
      %p276 = scmp.eq.s32.totalorder %s28, 1
      %p277 = por %p275, %p276
      %p278 = scmp.ne.s32.totalorder %s269, %s270
      %p279 = scmp.eq.s32.totalorder %s28, 0
      %p280 = por %p278, %p279
      %p281 = scmp.ne.s32.totalorder %s269, %s270
      %p282 = scmp.eq.s32.totalorder %s29, 1
      %p283 = por %p281, %p282
      %p285 = scmp.ne.s32.totalorder %s270, %s284
      %p286 = scmp.eq.s32.totalorder %s29, 0
      %p287 = por %p285, %p286
      %s289 = sadd.s32 %s288, 1
      %p292 = scmp.eq.s32.totalorder %s23, 1
      %p293 = scmp.ne.s32.totalorder %s288, %s290
      %p294 = scmp.eq.s32.totalorder %s23, 0
      %p295 = por %p293, %p294
      %p296 = scmp.ne.s32.totalorder %s288, %s290
      %p297 = scmp.eq.s32.totalorder %s28, 1
      %p298 = por %p296, %p297
      %p299 = scmp.ne.s32.totalorder %s290, %s291
      %p300 = scmp.eq.s32.totalorder %s28, 0
      %p301 = por %p299, %p300
      %p302 = scmp.ne.s32.totalorder %s290, %s291
      %p303 = scmp.eq.s32.totalorder %s29, 1
      %p304 = por %p302, %p303
      %p306 = scmp.ne.s32.totalorder %s291, %s305
      %p307 = scmp.eq.s32.totalorder %s29, 0
      %p308 = por %p306, %p307
      %s310 = sadd.s32 %s309, 1
      %p313 = scmp.eq.s32.totalorder %s23, 1
      %p314 = scmp.ne.s32.totalorder %s309, %s311
      %p315 = scmp.eq.s32.totalorder %s23, 0
      %p316 = por %p314, %p315
      %p317 = scmp.ne.s32.totalorder %s309, %s311
      %p318 = scmp.eq.s32.totalorder %s28, 1
      %p319 = por %p317, %p318
      %p320 = scmp.ne.s32.totalorder %s311, %s312
      %p321 = scmp.eq.s32.totalorder %s28, 0
      %p322 = por %p320, %p321
      %p323 = scmp.ne.s32.totalorder %s311, %s312
      %p324 = scmp.eq.s32.totalorder %s29, 1
      %p325 = por %p323, %p324
      %p327 = scmp.ne.s32.totalorder %s312, %s326
      %p328 = scmp.eq.s32.totalorder %s29, 0
      %p329 = por %p327, %p328
      %s330 = ssub.s32 %s23, %s30
      %p331 = scmp.eq.s32.totalorder %s330, 0
      %s333 = sadd.s32 %s332, 1
      %s334 = scalar_select %p331, %s332, %s333
      %p337 = pneg %p331
      %p338 = scmp.eq.s32.totalorder %s23, 1
      %p339 = por %p337, %p338
      %p340 = scmp.ne.s32.totalorder %s332, %s335
      %p341 = scmp.eq.s32.totalorder %s23, 0
      %p342 = por %p340, %p341
      %p343 = scmp.ne.s32.totalorder %s332, %s335
      %p344 = scmp.eq.s32.totalorder %s28, 1
      %p345 = por %p343, %p344
      %p346 = scmp.ne.s32.totalorder %s335, %s336
      %p347 = scmp.eq.s32.totalorder %s28, 0
      %p348 = por %p346, %p347
      %p349 = scmp.ne.s32.totalorder %s335, %s336
      %p350 = scmp.eq.s32.totalorder %s29, 1
      %p351 = por %p349, %p350
      %p353 = scmp.ne.s32.totalorder %s336, %s352
      %p354 = scmp.eq.s32.totalorder %s29, 0
      %p355 = por %p353, %p354
      %p356 = scmp.le.s32.totalorder 1, %s23
      %p357 = scmp.lt.s32.totalorder %s23, 3
      %p358 = pnand %p356, %p357
      %p359 = pneg %p358
      // Predicated region
      $region9: #{tpu_custom_call.1} parent=5 // pred_check
        _
      $region10: #{tpu_custom_call.1} parent=5 // pred_check_branch
        %361 = sbr.rel (%p358) target = $region12
      $region11: #{tpu_custom_call.1} parent=5 // pred_region
        %s362 = ssub.s32 %s23, 1
        // Predicated region
        $region13: #{tpu_custom_call.1} parent=11 // pred_check
          %p363 = pneg %p70
        $region14: #{tpu_custom_call.1} parent=11 // pred_check_branch
          %365 = sbr.rel (%p363) target = $region16
        $region15: #{tpu_custom_call.1} parent=11 // pred_region
          _
        $region16: #{tpu_custom_call.1} parent=11 // pred_fallthru
          _
        // Predicated region
        $region17: #{tpu_custom_call.1} parent=11 // pred_check
          %p366 = pneg %p91
        $region18: #{tpu_custom_call.1} parent=11 // pred_check_branch
          %368 = sbr.rel (%p366) target = $region20
        $region19: #{tpu_custom_call.1} parent=11 // pred_region
          _
        $region20: #{tpu_custom_call.1} parent=11 // pred_fallthru
          _
        // Predicated region
        $region21: #{tpu_custom_call.1} parent=11 // pred_check
          %p369 = pneg %p112
        $region22: #{tpu_custom_call.1} parent=11 // pred_check_branch
          %371 = sbr.rel (%p369) target = $region24
        $region23: #{tpu_custom_call.1} parent=11 // pred_region
          _
        $region24: #{tpu_custom_call.1} parent=11 // pred_fallthru
          _
        // Predicated region
        $region25: #{tpu_custom_call.1} parent=11 // pred_check
          %p372 = pneg %p133
        $region26: #{tpu_custom_call.1} parent=11 // pred_check_branch
          %374 = sbr.rel (%p372) target = $region28
        $region27: #{tpu_custom_call.1} parent=11 // pred_region
          _
        $region28: #{tpu_custom_call.1} parent=11 // pred_fallthru
          _
        // Predicated region
        $region29: #{tpu_custom_call.1} parent=11 // pred_check
          %p375 = pneg %p154
        $region30: #{tpu_custom_call.1} parent=11 // pred_check_branch
          %377 = sbr.rel (%p375) target = $region32
        $region31: #{tpu_custom_call.1} parent=11 // pred_region
          _
        $region32: #{tpu_custom_call.1} parent=11 // pred_fallthru
          _
        // Predicated region
        $region33: #{tpu_custom_call.1} parent=11 // pred_check
          %p378 = pneg %p175
        $region34: #{tpu_custom_call.1} parent=11 // pred_check_branch
          %380 = sbr.rel (%p378) target = $region36
        $region35: #{tpu_custom_call.1} parent=11 // pred_region
          _
        $region36: #{tpu_custom_call.1} parent=11 // pred_fallthru
          _
        // Predicated region
        $region37: #{tpu_custom_call.1} parent=11 // pred_check
          %p381 = pneg %p196
        $region38: #{tpu_custom_call.1} parent=11 // pred_check_branch
          %383 = sbr.rel (%p381) target = $region40
        $region39: #{tpu_custom_call.1} parent=11 // pred_region
          _
        $region40: #{tpu_custom_call.1} parent=11 // pred_fallthru
          _
        // Predicated region
        $region41: #{tpu_custom_call.1} parent=11 // pred_check
          %p384 = pneg %p217
        $region42: #{tpu_custom_call.1} parent=11 // pred_check_branch
          %386 = sbr.rel (%p384) target = $region44
        $region43: #{tpu_custom_call.1} parent=11 // pred_region
          _
        $region44: #{tpu_custom_call.1} parent=11 // pred_fallthru
          _
        // Predicated region
        $region45: #{tpu_custom_call.1} parent=11 // pred_check
          %p387 = pneg %p238
        $region46: #{tpu_custom_call.1} parent=11 // pred_check_branch
          %389 = sbr.rel (%p387) target = $region48
        $region47: #{tpu_custom_call.1} parent=11 // pred_region
          _
        $region48: #{tpu_custom_call.1} parent=11 // pred_fallthru
          _
        // Predicated region
        $region49: #{tpu_custom_call.1} parent=11 // pred_check
          %p390 = pneg %p259
        $region50: #{tpu_custom_call.1} parent=11 // pred_check_branch
          %392 = sbr.rel (%p390) target = $region52
        $region51: #{tpu_custom_call.1} parent=11 // pred_region
          _
        $region52: #{tpu_custom_call.1} parent=11 // pred_fallthru
          _
        // Predicated region
        $region53: #{tpu_custom_call.1} parent=11 // pred_check
          %p393 = pneg %p280
        $region54: #{tpu_custom_call.1} parent=11 // pred_check_branch
          %395 = sbr.rel (%p393) target = $region56
        $region55: #{tpu_custom_call.1} parent=11 // pred_region
          _
        $region56: #{tpu_custom_call.1} parent=11 // pred_fallthru
          _
        // Predicated region
        $region57: #{tpu_custom_call.1} parent=11 // pred_check
          %p396 = pneg %p301
        $region58: #{tpu_custom_call.1} parent=11 // pred_check_branch
          %398 = sbr.rel (%p396) target = $region60
        $region59: #{tpu_custom_call.1} parent=11 // pred_region
          _
        $region60: #{tpu_custom_call.1} parent=11 // pred_fallthru
          _
        // Predicated region
        $region61: #{tpu_custom_call.1} parent=11 // pred_check
          %p399 = pneg %p322
        $region62: #{tpu_custom_call.1} parent=11 // pred_check_branch
          %401 = sbr.rel (%p399) target = $region64
        $region63: #{tpu_custom_call.1} parent=11 // pred_region
          _
        $region64: #{tpu_custom_call.1} parent=11 // pred_fallthru
          _
      $region12: #{tpu_custom_call.1} parent=5 // pred_fallthru
        _
      %p402 = scmp.lt.s32.totalorder %s23, 2
      // Predicated region
      $region65: #{tpu_custom_call.1} parent=5 // pred_check
        %p403 = pneg %p402
      $region66: #{tpu_custom_call.1} parent=5 // pred_check_branch
        %405 = sbr.rel (%p403) target = $region68
      $region67: #{tpu_custom_call.1} parent=5 // pred_region
        // Predicated region
        $region69: #{tpu_custom_call.1} parent=67 // pred_check
          %p406 = pneg %p43
        $region70: #{tpu_custom_call.1} parent=67 // pred_check_branch
          %408 = sbr.rel (%p406) target = $region72
        $region71: #{tpu_custom_call.1} parent=67 // pred_region
          %s409 = smul.u32 16, %s23
          %p410 = scmp.lt.s32.totalorder %s409, 31
          %s411 = scalar_select %p410, %s409, 31
          %s412 = smul.addr %s411, 8
          %s413 = scalar_lea.vmem %s0, %s412
          %s414 = smul.u32 16, %s23
        $region72: #{tpu_custom_call.1} parent=67 // pred_fallthru
          _
      $region68: #{tpu_custom_call.1} parent=5 // pred_fallthru
        _
      %p415 = scmp.le.s32.totalorder 1, %s23
      %p416 = scmp.lt.s32.totalorder %s23, 3
      %p417 = pnand %p415, %p416
      %p418 = pneg %p417
      // Predicated region
      $region73: #{tpu_custom_call.1} parent=5 // pred_check
        _
      $region74: #{tpu_custom_call.1} parent=5 // pred_check_branch
        %420 = sbr.rel (%p417) target = $region76
      $region75: #{tpu_custom_call.1} parent=5 // pred_region
        %s421 = ssub.s32 %s23, 1
        %s422 = smul.u32 16, %s28
        %p423 = scmp.lt.s32.totalorder %s422, 31
        %s424 = scalar_select %p423, %s422, 31
        %s425 = smul.addr %s424, 8
        %s426 = scalar_lea.vmem %s0, %s425
        %p427 = pneg %p49
        %p428 = pneg %p46
        %p429 = pneg %p70
        %p430 = pneg %p67
        %p431 = pneg %p91
        %p432 = pneg %p88
        %p433 = pneg %p112
        %p434 = pneg %p109
        %p435 = pneg %p133
        %p436 = pneg %p130
        %p437 = pneg %p154
        %p438 = pneg %p151
        %p439 = pneg %p175
        %p440 = pneg %p172
        %p441 = pneg %p196
        %p442 = pneg %p193
        %p443 = pneg %p217
        %p444 = pneg %p214
        %p445 = pneg %p238
        %p446 = pneg %p235
        %p447 = pneg %p259
        %p448 = pneg %p256
        %p449 = pneg %p280
        %p450 = pneg %p277
        %p451 = pneg %p301
        %p452 = pneg %p298
        %p453 = pneg %p322
        %p454 = pneg %p319
        %p455 = pneg %p348
        %p456 = pneg %p345
        %s457 = sand.u32 %s335, 1
        %s458 = scalar_lea.sflag [#allocation7], %s457
        %s459 = sand.u32 %s335, 1
        %s460 = smul.addr %s459, 8
        %s461 = scalar_lea.vmem [#allocation6], %s460
        %s462 = smul.u32 16, %s28
        %p463 = scmp.lt.s32.totalorder %s462, 31
        %s464 = scalar_select %p463, %s462, 31
        %s465 = smul.addr %s464, 8
        %s466 = scalar_lea.vmem %s0, %s465
        %s467 = smul.u32 16, %s28
        %v468 = vld [vmem:[%s466] sm:$0xff]
        %v469 = vld [vmem:[%s466 + $0x8] sm:$0xff]
        %v470 = vld [vmem:[%s466 + $0x10] sm:$0xff]
        %v471 = vld [vmem:[%s466 + $0x18] sm:$0xff]
        %v472 = vld [vmem:[%s466 + $0x20] sm:$0xff]
        %v473 = vld [vmem:[%s466 + $0x28] sm:$0xff]
        %v474 = vld [vmem:[%s466 + $0x30] sm:$0xff]
        %v475 = vld [vmem:[%s466 + $0x38] sm:$0xff]
        %v476 = vld [vmem:[%s466 + $0x40] sm:$0xff]
        %v477 = vld [vmem:[%s466 + $0x48] sm:$0xff]
        %v478 = vld [vmem:[%s466 + $0x50] sm:$0xff]
        %v479 = vld [vmem:[%s466 + $0x58] sm:$0xff]
        %v480 = vld [vmem:[%s466 + $0x60] sm:$0xff]
        %v481 = vld [vmem:[%s466 + $0x68] sm:$0xff]
        %v482 = vld [vmem:[%s466 + $0x70] sm:$0xff]
        %v483 = vld [vmem:[%s466 + $0x78] sm:$0xff]
        %v484 = vld [vmem:[%s1] sm:$0xff]
        %v485 = vld [vmem:[%s1 + $0x8] sm:$0xff]
        %v486 = vld [vmem:[%s1 + $0x10] sm:$0xff]
        %v487 = vld [vmem:[%s1 + $0x18] sm:$0xff]
        %v488 = vld [vmem:[%s1 + $0x20] sm:$0xff]
        %v489 = vld [vmem:[%s1 + $0x28] sm:$0xff]
        %v490 = vld [vmem:[%s1 + $0x30] sm:$0xff]
        %v491 = vld [vmem:[%s1 + $0x38] sm:$0xff]
        %v492 = vld [vmem:[%s1 + $0x40] sm:$0xff]
        %v493 = vld [vmem:[%s1 + $0x48] sm:$0xff]
        %v494 = vld [vmem:[%s1 + $0x50] sm:$0xff]
        %v495 = vld [vmem:[%s1 + $0x58] sm:$0xff]
        %v496 = vld [vmem:[%s1 + $0x60] sm:$0xff]
        %v497 = vld [vmem:[%s1 + $0x68] sm:$0xff]
        %v498 = vld [vmem:[%s1 + $0x70] sm:$0xff]
        %v499 = vld [vmem:[%s1 + $0x78] sm:$0xff]
        %vm500 = vcmp.eq.s32.totalorder %v484, 0
        %vm501 = vcmp.eq.s32.totalorder %v485, 0
        %vm502 = vcmp.eq.s32.totalorder %v486, 0
        %vm503 = vcmp.eq.s32.totalorder %v487, 0
        %vm504 = vcmp.eq.s32.totalorder %v488, 0
        %vm505 = vcmp.eq.s32.totalorder %v489, 0
        %vm506 = vcmp.eq.s32.totalorder %v490, 0
        %vm507 = vcmp.eq.s32.totalorder %v491, 0
        %vm508 = vcmp.eq.s32.totalorder %v492, 0
        %vm509 = vcmp.eq.s32.totalorder %v493, 0
        %vm510 = vcmp.eq.s32.totalorder %v494, 0
        %vm511 = vcmp.eq.s32.totalorder %v495, 0
        %vm512 = vcmp.eq.s32.totalorder %v496, 0
        %vm513 = vcmp.eq.s32.totalorder %v497, 0
        %vm514 = vcmp.eq.s32.totalorder %v498, 0
        %vm515 = vcmp.eq.s32.totalorder %v499, 0
        %v516 = vrot.slane %v468, 7
        %v517 = vrot.slane %v469, 7
        %v518 = vrot.slane %v470, 7
        %v519 = vrot.slane %v471, 7
        %v520 = vrot.slane %v472, 7
        %v521 = vrot.slane %v473, 7
        %v522 = vrot.slane %v474, 7
        %v523 = vrot.slane %v475, 7
        %v524 = vrot.slane %v476, 7
        %v525 = vrot.slane %v477, 7
        %v526 = vrot.slane %v478, 7
        %v527 = vrot.slane %v479, 7
        %v528 = vrot.slane %v480, 7
        %v529 = vrot.slane %v481, 7
        %v530 = vrot.slane %v482, 7
        %v531 = vrot.slane %v483, 7
        %v532 = vlaneseq
        %v533 = vshrl.u32 %v532, 7
        %vm534 = vcmp.lt.s32.totalorder %v533, 1
        %v535 = vsel %vm534, %v530, %v531
        %v536 = vsel %vm534, %v529, %v530
        %v537 = vsel %vm534, %v528, %v529
        %v538 = vsel %vm534, %v527, %v528
        %v539 = vsel %vm534, %v526, %v527
        %v540 = vsel %vm534, %v525, %v526
        %v541 = vsel %vm534, %v524, %v525
        %v542 = vsel %vm534, %v523, %v524
        %v543 = vsel %vm534, %v522, %v523
        %v544 = vsel %vm534, %v521, %v522
        %v545 = vsel %vm534, %v520, %v521
        %v546 = vsel %vm534, %v519, %v520
        %v547 = vsel %vm534, %v518, %v519
        %v548 = vsel %vm534, %v517, %v518
        %v549 = vsel %vm534, %v516, %v517
        %v550 = vsel %vm534, %v531, %v516
        %v551 = vsel %vm500, 1, 0
        %v552 = vsel %vm501, 1, 0
        %v553 = vsel %vm502, 1, 0
        %v554 = vsel %vm503, 1, 0
        %v555 = vsel %vm504, 1, 0
        %v556 = vsel %vm505, 1, 0
        %v557 = vsel %vm506, 1, 0
        %v558 = vsel %vm507, 1, 0
        %v559 = vsel %vm508, 1, 0
        %v560 = vsel %vm509, 1, 0
        %v561 = vsel %vm510, 1, 0
        %v562 = vsel %vm511, 1, 0
        %v563 = vsel %vm512, 1, 0
        %v564 = vsel %vm513, 1, 0
        %v565 = vsel %vm514, 1, 0
        %v566 = vsel %vm515, 1, 0
        %567 = vset.pattern.permute.xlu0 0
        %568 = vperm.xlu0 %567, %v551
        %v569 = vpop.permute.xlu0 %568
        %570 = vset.pattern.permute.xlu0 0
        %571 = vperm.xlu0 %570, %v552
        %v572 = vpop.permute.xlu0 %571
        %573 = vset.pattern.permute.xlu0 0
        %574 = vperm.xlu0 %573, %v553
        %v575 = vpop.permute.xlu0 %574
        %576 = vset.pattern.permute.xlu0 0
        %577 = vperm.xlu0 %576, %v554
        %v578 = vpop.permute.xlu0 %577
        %579 = vset.pattern.permute.xlu0 0
        %580 = vperm.xlu0 %579, %v555
        %v581 = vpop.permute.xlu0 %580
        %582 = vset.pattern.permute.xlu0 0
        %583 = vperm.xlu0 %582, %v556
        %v584 = vpop.permute.xlu0 %583
        %585 = vset.pattern.permute.xlu0 0
        %586 = vperm.xlu0 %585, %v557
        %v587 = vpop.permute.xlu0 %586
        %588 = vset.pattern.permute.xlu0 0
        %589 = vperm.xlu0 %588, %v558
        %v590 = vpop.permute.xlu0 %589
        %591 = vset.pattern.permute.xlu0 0
        %592 = vperm.xlu0 %591, %v559
        %v593 = vpop.permute.xlu0 %592
        %594 = vset.pattern.permute.xlu0 0
        %595 = vperm.xlu0 %594, %v560
        %v596 = vpop.permute.xlu0 %595
        %597 = vset.pattern.permute.xlu0 0
        %598 = vperm.xlu0 %597, %v561
        %v599 = vpop.permute.xlu0 %598
        %600 = vset.pattern.permute.xlu0 0
        %601 = vperm.xlu0 %600, %v562
        %v602 = vpop.permute.xlu0 %601
        %603 = vset.pattern.permute.xlu0 0
        %604 = vperm.xlu0 %603, %v563
        %v605 = vpop.permute.xlu0 %604
        %606 = vset.pattern.permute.xlu0 0
        %607 = vperm.xlu0 %606, %v564
        %v608 = vpop.permute.xlu0 %607
        %609 = vset.pattern.permute.xlu0 0
        %610 = vperm.xlu0 %609, %v565
        %v611 = vpop.permute.xlu0 %610
        %612 = vset.pattern.permute.xlu0 0
        %613 = vperm.xlu0 %612, %v566
        %v614 = vpop.permute.xlu0 %613
        %vm615 = vcmp.eq.s32.totalorder %v569, 1
        %vm616 = vcmp.eq.s32.totalorder %v572, 1
        %vm617 = vcmp.eq.s32.totalorder %v575, 1
        %vm618 = vcmp.eq.s32.totalorder %v578, 1
        %vm619 = vcmp.eq.s32.totalorder %v581, 1
        %vm620 = vcmp.eq.s32.totalorder %v584, 1
        %vm621 = vcmp.eq.s32.totalorder %v587, 1
        %vm622 = vcmp.eq.s32.totalorder %v590, 1
        %vm623 = vcmp.eq.s32.totalorder %v593, 1
        %vm624 = vcmp.eq.s32.totalorder %v596, 1
        %vm625 = vcmp.eq.s32.totalorder %v599, 1
        %vm626 = vcmp.eq.s32.totalorder %v602, 1
        %vm627 = vcmp.eq.s32.totalorder %v605, 1
        %vm628 = vcmp.eq.s32.totalorder %v608, 1
        %vm629 = vcmp.eq.s32.totalorder %v611, 1
        %vm630 = vcmp.eq.s32.totalorder %v614, 1
        %v631 = vsel %vm615, 0.0, %v550
        %v632 = vsel %vm616, 0.0, %v549
        %v633 = vsel %vm617, 0.0, %v548
        %v634 = vsel %vm618, 0.0, %v547
        %v635 = vsel %vm619, 0.0, %v546
        %v636 = vsel %vm620, 0.0, %v545
        %v637 = vsel %vm621, 0.0, %v544
        %v638 = vsel %vm622, 0.0, %v543
        %v639 = vsel %vm623, 0.0, %v542
        %v640 = vsel %vm624, 0.0, %v541
        %v641 = vsel %vm625, 0.0, %v540
        %v642 = vsel %vm626, 0.0, %v539
        %v643 = vsel %vm627, 0.0, %v538
        %v644 = vsel %vm628, 0.0, %v537
        %v645 = vsel %vm629, 0.0, %v536
        %v646 = vsel %vm630, 0.0, %v535
        %vm647 = vcmp.eq.s32.totalorder %v484, 15
        %vm648 = vcmp.eq.s32.totalorder %v485, 15
        %vm649 = vcmp.eq.s32.totalorder %v486, 15
        %vm650 = vcmp.eq.s32.totalorder %v487, 15
        %vm651 = vcmp.eq.s32.totalorder %v488, 15
        %vm652 = vcmp.eq.s32.totalorder %v489, 15
        %vm653 = vcmp.eq.s32.totalorder %v490, 15
        %vm654 = vcmp.eq.s32.totalorder %v491, 15
        %vm655 = vcmp.eq.s32.totalorder %v492, 15
        %vm656 = vcmp.eq.s32.totalorder %v493, 15
        %vm657 = vcmp.eq.s32.totalorder %v494, 15
        %vm658 = vcmp.eq.s32.totalorder %v495, 15
        %vm659 = vcmp.eq.s32.totalorder %v496, 15
        %vm660 = vcmp.eq.s32.totalorder %v497, 15
        %vm661 = vcmp.eq.s32.totalorder %v498, 15
        %vm662 = vcmp.eq.s32.totalorder %v499, 15
        %v663 = vrot.slane %v468, 1
        %v664 = vrot.slane %v469, 1
        %v665 = vrot.slane %v470, 1
        %v666 = vrot.slane %v471, 1
        %v667 = vrot.slane %v472, 1
        %v668 = vrot.slane %v473, 1
        %v669 = vrot.slane %v474, 1
        %v670 = vrot.slane %v475, 1
        %v671 = vrot.slane %v476, 1
        %v672 = vrot.slane %v477, 1
        %v673 = vrot.slane %v478, 1
        %v674 = vrot.slane %v479, 1
        %v675 = vrot.slane %v480, 1
        %v676 = vrot.slane %v481, 1
        %v677 = vrot.slane %v482, 1
        %v678 = vrot.slane %v483, 1
        %vm679 = vcmp.lt.s32.totalorder %v533, 7
        %v680 = vsel %vm679, %v677, %v678
        %v681 = vsel %vm679, %v676, %v677
        %v682 = vsel %vm679, %v675, %v676
        %v683 = vsel %vm679, %v674, %v675
        %v684 = vsel %vm679, %v673, %v674
        %v685 = vsel %vm679, %v672, %v673
        %v686 = vsel %vm679, %v671, %v672
        %v687 = vsel %vm679, %v670, %v671
        %v688 = vsel %vm679, %v669, %v670
        %v689 = vsel %vm679, %v668, %v669
        %v690 = vsel %vm679, %v667, %v668
        %v691 = vsel %vm679, %v666, %v667
        %v692 = vsel %vm679, %v665, %v666
        %v693 = vsel %vm679, %v664, %v665
        %v694 = vsel %vm679, %v663, %v664
        %v695 = vsel %vm679, %v678, %v663
        %v696 = vsel %vm647, 1, 0
        %v697 = vsel %vm648, 1, 0
        %v698 = vsel %vm649, 1, 0
        %v699 = vsel %vm650, 1, 0
        %v700 = vsel %vm651, 1, 0
        %v701 = vsel %vm652, 1, 0
        %v702 = vsel %vm653, 1, 0
        %v703 = vsel %vm654, 1, 0
        %v704 = vsel %vm655, 1, 0
        %v705 = vsel %vm656, 1, 0
        %v706 = vsel %vm657, 1, 0
        %v707 = vsel %vm658, 1, 0
        %v708 = vsel %vm659, 1, 0
        %v709 = vsel %vm660, 1, 0
        %v710 = vsel %vm661, 1, 0
        %v711 = vsel %vm662, 1, 0
        %712 = vset.pattern.permute.xlu0 0
        %713 = vperm.xlu0 %712, %v696
        %v714 = vpop.permute.xlu0 %713
        %715 = vset.pattern.permute.xlu0 0
        %716 = vperm.xlu0 %715, %v697
        %v717 = vpop.permute.xlu0 %716
        %718 = vset.pattern.permute.xlu0 0
        %719 = vperm.xlu0 %718, %v698
        %v720 = vpop.permute.xlu0 %719
        %721 = vset.pattern.permute.xlu0 0
        %722 = vperm.xlu0 %721, %v699
        %v723 = vpop.permute.xlu0 %722
        %724 = vset.pattern.permute.xlu0 0
        %725 = vperm.xlu0 %724, %v700
        %v726 = vpop.permute.xlu0 %725
        %727 = vset.pattern.permute.xlu0 0
        %728 = vperm.xlu0 %727, %v701
        %v729 = vpop.permute.xlu0 %728
        %730 = vset.pattern.permute.xlu0 0
        %731 = vperm.xlu0 %730, %v702
        %v732 = vpop.permute.xlu0 %731
        %733 = vset.pattern.permute.xlu0 0
        %734 = vperm.xlu0 %733, %v703
        %v735 = vpop.permute.xlu0 %734
        %736 = vset.pattern.permute.xlu0 0
        %737 = vperm.xlu0 %736, %v704
        %v738 = vpop.permute.xlu0 %737
        %739 = vset.pattern.permute.xlu0 0
        %740 = vperm.xlu0 %739, %v705
        %v741 = vpop.permute.xlu0 %740
        %742 = vset.pattern.permute.xlu0 0
        %743 = vperm.xlu0 %742, %v706
        %v744 = vpop.permute.xlu0 %743
        %745 = vset.pattern.permute.xlu0 0
        %746 = vperm.xlu0 %745, %v707
        %v747 = vpop.permute.xlu0 %746
        %748 = vset.pattern.permute.xlu0 0
        %749 = vperm.xlu0 %748, %v708
        %v750 = vpop.permute.xlu0 %749
        %751 = vset.pattern.permute.xlu0 0
        %752 = vperm.xlu0 %751, %v709
        %v753 = vpop.permute.xlu0 %752
        %754 = vset.pattern.permute.xlu0 0
        %755 = vperm.xlu0 %754, %v710
        %v756 = vpop.permute.xlu0 %755
        %757 = vset.pattern.permute.xlu0 0
        %758 = vperm.xlu0 %757, %v711
        %v759 = vpop.permute.xlu0 %758
        %vm760 = vcmp.eq.s32.totalorder %v714, 1
        %vm761 = vcmp.eq.s32.totalorder %v717, 1
        %vm762 = vcmp.eq.s32.totalorder %v720, 1
        %vm763 = vcmp.eq.s32.totalorder %v723, 1
        %vm764 = vcmp.eq.s32.totalorder %v726, 1
        %vm765 = vcmp.eq.s32.totalorder %v729, 1
        %vm766 = vcmp.eq.s32.totalorder %v732, 1
        %vm767 = vcmp.eq.s32.totalorder %v735, 1
        %vm768 = vcmp.eq.s32.totalorder %v738, 1
        %vm769 = vcmp.eq.s32.totalorder %v741, 1
        %vm770 = vcmp.eq.s32.totalorder %v744, 1
        %vm771 = vcmp.eq.s32.totalorder %v747, 1
        %vm772 = vcmp.eq.s32.totalorder %v750, 1
        %vm773 = vcmp.eq.s32.totalorder %v753, 1
        %vm774 = vcmp.eq.s32.totalorder %v756, 1
        %vm775 = vcmp.eq.s32.totalorder %v759, 1
        %v776 = vsel %vm760, 0.0, %v694
        %v777 = vsel %vm761, 0.0, %v693
        %v778 = vsel %vm762, 0.0, %v692
        %v779 = vsel %vm763, 0.0, %v691
        %v780 = vsel %vm764, 0.0, %v690
        %v781 = vsel %vm765, 0.0, %v689
        %v782 = vsel %vm766, 0.0, %v688
        %v783 = vsel %vm767, 0.0, %v687
        %v784 = vsel %vm768, 0.0, %v686
        %v785 = vsel %vm769, 0.0, %v685
        %v786 = vsel %vm770, 0.0, %v684
        %v787 = vsel %vm771, 0.0, %v683
        %v788 = vsel %vm772, 0.0, %v682
        %v789 = vsel %vm773, 0.0, %v681
        %v790 = vsel %vm774, 0.0, %v680
        %v791 = vsel %vm775, 0.0, %v695
        %808 = vrot.lane.b32.xlu0 %v468, 4
        %v809 = vpop.permute.xlu0 %808
        %810 = vrot.lane.b32.xlu0 %v469, 4
        %v811 = vpop.permute.xlu0 %810
        %812 = vrot.lane.b32.xlu0 %v470, 4
        %v813 = vpop.permute.xlu0 %812
        %814 = vrot.lane.b32.xlu0 %v471, 4
        %v815 = vpop.permute.xlu0 %814
        %816 = vrot.lane.b32.xlu0 %v472, 4
        %v817 = vpop.permute.xlu0 %816
        %818 = vrot.lane.b32.xlu0 %v473, 4
        %v819 = vpop.permute.xlu0 %818
        %820 = vrot.lane.b32.xlu0 %v474, 4
        %v821 = vpop.permute.xlu0 %820
        %822 = vrot.lane.b32.xlu0 %v475, 4
        %v823 = vpop.permute.xlu0 %822
        %824 = vrot.lane.b32.xlu0 %v476, 4
        %v825 = vpop.permute.xlu0 %824
        %826 = vrot.lane.b32.xlu0 %v477, 4
        %v827 = vpop.permute.xlu0 %826
        %828 = vrot.lane.b32.xlu0 %v478, 4
        %v829 = vpop.permute.xlu0 %828
        %830 = vrot.lane.b32.xlu0 %v479, 4
        %v831 = vpop.permute.xlu0 %830
        %832 = vrot.lane.b32.xlu0 %v480, 4
        %v833 = vpop.permute.xlu0 %832
        %834 = vrot.lane.b32.xlu0 %v481, 4
        %v835 = vpop.permute.xlu0 %834
        %836 = vrot.lane.b32.xlu0 %v482, 4
        %v837 = vpop.permute.xlu0 %836
        %838 = vrot.lane.b32.xlu0 %v483, 4
        %v839 = vpop.permute.xlu0 %838
        %872 = vrot.lane.b32.xlu0 %v776, 8
        %v873 = vpop.permute.xlu0 %872
        %874 = vrot.lane.b32.xlu0 %v777, 8
        %v875 = vpop.permute.xlu0 %874
        %876 = vrot.lane.b32.xlu0 %v778, 8
        %v877 = vpop.permute.xlu0 %876
        %878 = vrot.lane.b32.xlu0 %v779, 8
        %v879 = vpop.permute.xlu0 %878
        %880 = vrot.lane.b32.xlu0 %v780, 8
        %v881 = vpop.permute.xlu0 %880
        %882 = vrot.lane.b32.xlu0 %v781, 8
        %v883 = vpop.permute.xlu0 %882
        %884 = vrot.lane.b32.xlu0 %v782, 8
        %v885 = vpop.permute.xlu0 %884
        %886 = vrot.lane.b32.xlu0 %v783, 8
        %v887 = vpop.permute.xlu0 %886
        %888 = vrot.lane.b32.xlu0 %v784, 8
        %v889 = vpop.permute.xlu0 %888
        %890 = vrot.lane.b32.xlu0 %v785, 8
        %v891 = vpop.permute.xlu0 %890
        %892 = vrot.lane.b32.xlu0 %v786, 8
        %v893 = vpop.permute.xlu0 %892
        %894 = vrot.lane.b32.xlu0 %v787, 8
        %v895 = vpop.permute.xlu0 %894
        %896 = vrot.lane.b32.xlu0 %v788, 8
        %v897 = vpop.permute.xlu0 %896
        %898 = vrot.lane.b32.xlu0 %v789, 8
        %v899 = vpop.permute.xlu0 %898
        %900 = vrot.lane.b32.xlu0 %v790, 8
        %v901 = vpop.permute.xlu0 %900
        %902 = vrot.lane.b32.xlu0 %v791, 8
        %v903 = vpop.permute.xlu0 %902
        %vm920 = vcmask 31744
        %v921 = vsel %vm920, %v631, %v809
        %v922 = vsel %vm920, %v632, %v811
        %v923 = vsel %vm920, %v633, %v813
        %v924 = vsel %vm920, %v634, %v815
        %v925 = vsel %vm920, %v635, %v817
        %v926 = vsel %vm920, %v636, %v819
        %v927 = vsel %vm920, %v637, %v821
        %v928 = vsel %vm920, %v638, %v823
        %v929 = vsel %vm920, %v639, %v825
        %v930 = vsel %vm920, %v640, %v827
        %v931 = vsel %vm920, %v641, %v829
        %v932 = vsel %vm920, %v642, %v831
        %v933 = vsel %vm920, %v643, %v833
        %v934 = vsel %vm920, %v644, %v835
        %v935 = vsel %vm920, %v645, %v837
        %v936 = vsel %vm920, %v646, %v839
        %vm937 = vcmask 64512
        %v938 = vsel %vm937, %v921, %v873
        %v939 = vsel %vm937, %v922, %v875
        %v940 = vsel %vm937, %v923, %v877
        %v941 = vsel %vm937, %v924, %v879
        %v942 = vsel %vm937, %v925, %v881
        %v943 = vsel %vm937, %v926, %v883
        %v944 = vsel %vm937, %v927, %v885
        %v945 = vsel %vm937, %v928, %v887
        %v946 = vsel %vm937, %v929, %v889
        %v947 = vsel %vm937, %v930, %v891
        %v948 = vsel %vm937, %v931, %v893
        %v949 = vsel %vm937, %v932, %v895
        %v950 = vsel %vm937, %v933, %v897
        %v951 = vsel %vm937, %v934, %v899
        %v952 = vsel %vm937, %v935, %v901
        %v953 = vsel %vm937, %v936, %v903
        %v954 = vld [vmem:[%s4] sm:$0xff]
        %v955 = vld [vmem:[%s4 + $0x8] sm:$0xf]
        %v956 = vld [vmem:[%s5] sm:$0x1]
        %v958 = vlaneseq
        %v959 = vshrl.u32 %v958, 7
        %v960 = vsub.s32 0, %v959
        %v961 = vrot.slane %v956, %v960
        %vm963 = vcmask 97280
        %v965 = vsel %vm963, %v938, 0
        %v968 = vsel %vm963, %v939, 0
        %v971 = vsel %vm963, %v940, 0
        %v974 = vsel %vm963, %v941, 0
        %v977 = vsel %vm963, %v942, 0
        %v980 = vsel %vm963, %v943, 0
        %v983 = vsel %vm963, %v944, 0
        %v986 = vsel %vm963, %v945, 0
        %v989 = vsel %vm963, %v946, 0
        %v992 = vsel %vm963, %v947, 0
        %v995 = vsel %vm963, %v948, 0
        %v998 = vsel %vm963, %v949, 0
        %v1001 = vsel %vm963, %v950, 0
        %v1004 = vsel %vm963, %v951, 0
        %v1007 = vsel %vm963, %v952, 0
        %v1010 = vsel %vm963, %v953, 0
        %vm1012 = vcmask 1043456
        %v1014 = vsel %vm1012, %v955, 0
        %1016 = vmatprep.subr.mxu0 0.0
        %1017 = vmatpush1.msra.mxu0 %v954
        %1018 = vmatprep.subr.mxu0 0.0
        %1019 = vmatpush1.msra.mxu0 %v1014
        %1020 = vmatprep.subr.mxu0 0.0
        %1021 = vmatpush1.msra.mxu0 0.0
        %1022 = vmatprep.subr.mxu0 0.0
        %1023 = vmatpush1.msra.mxu0 0.0
        %1024 = vmatprep.subr.mxu0 0.0
        %1025 = vmatpush1.msra.mxu0 0.0
        %1026 = vmatprep.subr.mxu0 0.0
        %1027 = vmatpush1.msra.mxu0 0.0
        %1028 = vmatprep.subr.mxu0 0.0
        %1029 = vmatpush1.msra.mxu0 0.0
        %1030 = vmatprep.subr.mxu0 0.0
        %1031 = vmatpush1.msra.mxu0 0.0
        %1032 = vmatprep.subr.mxu0 0.0
        %1033 = vmatpush1.msra.mxu0 0.0
        %1034 = vmatprep.subr.mxu0 0.0
        %1035 = vmatpush1.msra.mxu0 0.0
        %1036 = vmatprep.subr.mxu0 0.0
        %1037 = vmatpush1.msra.mxu0 0.0
        %1038 = vmatprep.subr.mxu0 0.0
        %1039 = vmatpush1.msra.mxu0 0.0
        %1040 = vmatprep.subr.mxu0 0.0
        %1041 = vmatpush1.msra.mxu0 0.0
        %1042 = vmatprep.subr.mxu0 0.0
        %1043 = vmatpush1.msra.mxu0 0.0
        %1044 = vmatprep.subr.mxu0 0.0
        %1045 = vmatpush1.msra.mxu0 0.0
        %1046 = vmatprep.subr.mxu0 0.0
        %1047 = vmatpush1.msra.mxu0 0.0
        %1048 = vmatprep.subr.mxu0 0.0
        %1049 = vmatpush1.msra.mxu0 0.0
        %1050 = vmatprep.subr.mxu0 0.0
        %1051 = vmatpush1.msra.mxu0 0.0
        %1052 = vmatprep.subr.mxu0 0.0
        %1053 = vmatpush1.msra.mxu0 0.0
        %1054 = vmatprep.subr.mxu0 0.0
        %1055 = vmatpush1.msra.mxu0 0.0
        %1056 = vmatprep.subr.mxu0 0.0
        %1057 = vmatpush1.msra.mxu0 0.0
        %1058 = vmatprep.subr.mxu0 0.0
        %1059 = vmatpush1.msra.mxu0 0.0
        %1060 = vmatprep.subr.mxu0 0.0
        %1061 = vmatpush1.msra.mxu0 0.0
        %1062 = vmatprep.subr.mxu0 0.0
        %1063 = vmatpush1.msra.mxu0 0.0
        %1064 = vmatprep.subr.mxu0 0.0
        %1065 = vmatpush1.msra.mxu0 0.0
        %1066 = vmatprep.subr.mxu0 0.0
        %1067 = vmatpush1.msra.mxu0 0.0
        %1068 = vmatprep.subr.mxu0 0.0
        %1069 = vmatpush1.msra.mxu0 0.0
        %1070 = vmatprep.subr.mxu0 0.0
        %1071 = vmatpush1.msra.mxu0 0.0
        %1072 = vmatprep.subr.mxu0 0.0
        %1073 = vmatpush1.msra.mxu0 0.0
        %1074 = vmatprep.subr.mxu0 0.0
        %1075 = vmatpush1.msra.mxu0 0.0
        %1076 = vmatprep.subr.mxu0 0.0
        %1077 = vmatpush1.msra.mxu0 0.0
        %1078 = vmatprep.subr.mxu0 0.0
        %1079 = vmatpush1.msra.mxu0 0.0
        %1080 = vmatprep.mubr.f32.mxu0 0.0
        %1081 = vmatmul.mubr.f32.gmra.mrb[0].mxu0 %v965
        %v1082 = vpop.f32.mrb[0].mxu0
        %v1083 = vadd.f32 %v961, %v1082
        %v1084 = vpop.f32.mrb[0].mxu0
        %1085 = vmatprep.mubr.f32.mxu0 0.0
        %1086 = vmatmul.mubr.f32.gmra.mrb[0].mxu0 %v968
        %v1087 = vpop.f32.mrb[0].mxu0
        %v1088 = vadd.f32 %v961, %v1087
        %v1089 = vpop.f32.mrb[0].mxu0
        %1090 = vmatprep.mubr.f32.mxu0 0.0
        %1091 = vmatmul.mubr.f32.gmra.mrb[0].mxu0 %v971
        %v1092 = vpop.f32.mrb[0].mxu0
        %v1093 = vadd.f32 %v961, %v1092
        %v1094 = vpop.f32.mrb[0].mxu0
        %1095 = vmatprep.mubr.f32.mxu0 0.0
        %1096 = vmatmul.mubr.f32.gmra.mrb[0].mxu0 %v974
        %v1097 = vpop.f32.mrb[0].mxu0
        %v1098 = vadd.f32 %v961, %v1097
        %v1099 = vpop.f32.mrb[0].mxu0
        %1100 = vmatprep.mubr.f32.mxu0 0.0
        %1101 = vmatmul.mubr.f32.gmra.mrb[0].mxu0 %v977
        %v1102 = vpop.f32.mrb[0].mxu0
        %v1103 = vadd.f32 %v961, %v1102
        %v1104 = vpop.f32.mrb[0].mxu0
        %1105 = vmatprep.mubr.f32.mxu0 0.0
        %1106 = vmatmul.mubr.f32.gmra.mrb[0].mxu0 %v980
        %v1107 = vpop.f32.mrb[0].mxu0
        %v1108 = vadd.f32 %v961, %v1107
        %v1109 = vpop.f32.mrb[0].mxu0
        %1110 = vmatprep.mubr.f32.mxu0 0.0
        %1111 = vmatmul.mubr.f32.gmra.mrb[0].mxu0 %v983
        %v1112 = vpop.f32.mrb[0].mxu0
        %v1113 = vadd.f32 %v961, %v1112
        %v1114 = vpop.f32.mrb[0].mxu0
        %1115 = vmatprep.mubr.f32.mxu0 0.0
        %1116 = vmatmul.mubr.f32.gmra.mrb[0].mxu0 %v986
        %v1117 = vpop.f32.mrb[0].mxu0
        %v1118 = vadd.f32 %v961, %v1117
        %v1119 = vpop.f32.mrb[0].mxu0
        %1120 = vmatprep.mubr.f32.mxu0 0.0
        %1121 = vmatmul.mubr.f32.gmra.mrb[0].mxu0 %v989
        %v1122 = vpop.f32.mrb[0].mxu0
        %v1123 = vadd.f32 %v961, %v1122
        %v1124 = vpop.f32.mrb[0].mxu0
        %1125 = vmatprep.mubr.f32.mxu0 0.0
        %1126 = vmatmul.mubr.f32.gmra.mrb[0].mxu0 %v992
        %v1127 = vpop.f32.mrb[0].mxu0
        %v1128 = vadd.f32 %v961, %v1127
        %v1129 = vpop.f32.mrb[0].mxu0
        %1130 = vmatprep.mubr.f32.mxu0 0.0
        %1131 = vmatmul.mubr.f32.gmra.mrb[0].mxu0 %v995
        %v1132 = vpop.f32.mrb[0].mxu0
        %v1133 = vadd.f32 %v961, %v1132
        %v1134 = vpop.f32.mrb[0].mxu0
        %1135 = vmatprep.mubr.f32.mxu0 0.0
        %1136 = vmatmul.mubr.f32.gmra.mrb[0].mxu0 %v998
        %v1137 = vpop.f32.mrb[0].mxu0
        %v1138 = vadd.f32 %v961, %v1137
        %v1139 = vpop.f32.mrb[0].mxu0
        %1140 = vmatprep.mubr.f32.mxu0 0.0
        %1141 = vmatmul.mubr.f32.gmra.mrb[0].mxu0 %v1001
        %v1142 = vpop.f32.mrb[0].mxu0
        %v1143 = vadd.f32 %v961, %v1142
        %v1144 = vpop.f32.mrb[0].mxu0
        %1145 = vmatprep.mubr.f32.mxu0 0.0
        %1146 = vmatmul.mubr.f32.gmra.mrb[0].mxu0 %v1004
        %v1147 = vpop.f32.mrb[0].mxu0
        %v1148 = vadd.f32 %v961, %v1147
        %v1149 = vpop.f32.mrb[0].mxu0
        %1150 = vmatprep.mubr.f32.mxu0 0.0
        %1151 = vmatmul.mubr.f32.gmra.mrb[0].mxu0 %v1007
        %v1152 = vpop.f32.mrb[0].mxu0
        %v1153 = vadd.f32 %v961, %v1152
        %v1154 = vpop.f32.mrb[0].mxu0
        %1155 = vmatprep.mubr.f32.mxu0 0.0
        %1156 = vmatmul.mubr.f32.gmra.mrb[0].mxu0 %v1010
        %v1157 = vpop.f32.mrb[0].mxu0
        %v1158 = vadd.f32 %v961, %v1157
        %v1159 = vpop.f32.mrb[0].mxu0
        %1160 = vdwg.mxu0
        %v1161 = vmax.f32 %v1083, 0.0
        %v1162 = vmax.f32 %v1088, 0.0
        %v1163 = vmax.f32 %v1093, 0.0
        %v1164 = vmax.f32 %v1098, 0.0
        %v1165 = vmax.f32 %v1103, 0.0
        %v1166 = vmax.f32 %v1108, 0.0
        %v1167 = vmax.f32 %v1113, 0.0
        %v1168 = vmax.f32 %v1118, 0.0
        %v1169 = vmax.f32 %v1123, 0.0
        %v1170 = vmax.f32 %v1128, 0.0
        %v1171 = vmax.f32 %v1133, 0.0
        %v1172 = vmax.f32 %v1138, 0.0
        %v1173 = vmax.f32 %v1143, 0.0
        %v1174 = vmax.f32 %v1148, 0.0
        %v1175 = vmax.f32 %v1153, 0.0
        %v1176 = vmax.f32 %v1158, 0.0
        %1177 = vst.msk [vmem:[#allocation2] sm:$0xff] %vm937, %v1161
        %1178 = vst.msk [vmem:[#allocation2 + $0x8] sm:$0xff] %vm937, %v1162
        %1179 = vst.msk [vmem:[#allocation2 + $0x10] sm:$0xff] %vm937, %v1163
        %1180 = vst.msk [vmem:[#allocation2 + $0x18] sm:$0xff] %vm937, %v1164
        %1181 = vst.msk [vmem:[#allocation2 + $0x20] sm:$0xff] %vm937, %v1165
        %1182 = vst.msk [vmem:[#allocation2 + $0x28] sm:$0xff] %vm937, %v1166
        %1183 = vst.msk [vmem:[#allocation2 + $0x30] sm:$0xff] %vm937, %v1167
        %1184 = vst.msk [vmem:[#allocation2 + $0x38] sm:$0xff] %vm937, %v1168
        %1185 = vst.msk [vmem:[#allocation2 + $0x40] sm:$0xff] %vm937, %v1169
        %1186 = vst.msk [vmem:[#allocation2 + $0x48] sm:$0xff] %vm937, %v1170
        %1187 = vst.msk [vmem:[#allocation2 + $0x50] sm:$0xff] %vm937, %v1171
        %1188 = vst.msk [vmem:[#allocation2 + $0x58] sm:$0xff] %vm937, %v1172
        %1189 = vst.msk [vmem:[#allocation2 + $0x60] sm:$0xff] %vm937, %v1173
        %1190 = vst.msk [vmem:[#allocation2 + $0x68] sm:$0xff] %vm937, %v1174
        %1191 = vst.msk [vmem:[#allocation2 + $0x70] sm:$0xff] %vm937, %v1175
        %1192 = vst.msk [vmem:[#allocation2 + $0x78] sm:$0xff] %vm937, %v1176
        %v1193 = vld [vmem:[#allocation2] ss:$2 sm:$0xff]
        %s1194 = scalar_lea.vmem [#allocation2], 16
        %v1195 = vld [vmem:[%s1194] ss:$2 sm:$0xff]
        %s1196 = scalar_lea.vmem [#allocation2], 32
        %v1197 = vld [vmem:[%s1196] ss:$2 sm:$0xff]
        %s1198 = scalar_lea.vmem [#allocation2], 48
        %v1199 = vld [vmem:[%s1198] ss:$2 sm:$0xff]
        %s1200 = scalar_lea.vmem [#allocation2], 64
        %v1201 = vld [vmem:[%s1200] ss:$2 sm:$0xff]
        %s1202 = scalar_lea.vmem [#allocation2], 80
        %v1203 = vld [vmem:[%s1202] ss:$2 sm:$0xff]
        %s1204 = scalar_lea.vmem [#allocation2], 96
        %v1205 = vld [vmem:[%s1204] ss:$2 sm:$0xff]
        %s1206 = scalar_lea.vmem [#allocation2], 112
        %v1207 = vld [vmem:[%s1206] ss:$2 sm:$0xff]
        %s1208 = scalar_lea.vmem [#allocation2], 1
        %v1209 = vld [vmem:[%s1208] ss:$2 sm:$0xff]
        %s1210 = scalar_lea.vmem [#allocation2], 17
        %v1211 = vld [vmem:[%s1210] ss:$2 sm:$0xff]
        %s1212 = scalar_lea.vmem [#allocation2], 33
        %v1213 = vld [vmem:[%s1212] ss:$2 sm:$0xff]
        %s1214 = scalar_lea.vmem [#allocation2], 49
        %v1215 = vld [vmem:[%s1214] ss:$2 sm:$0xff]
        %s1216 = scalar_lea.vmem [#allocation2], 65
        %v1217 = vld [vmem:[%s1216] ss:$2 sm:$0xff]
        %s1218 = scalar_lea.vmem [#allocation2], 81
        %v1219 = vld [vmem:[%s1218] ss:$2 sm:$0xff]
        %s1220 = scalar_lea.vmem [#allocation2], 97
        %v1221 = vld [vmem:[%s1220] ss:$2 sm:$0xff]
        %s1222 = scalar_lea.vmem [#allocation2], 113
        %v1223 = vld [vmem:[%s1222] ss:$2 sm:$0xff]
        %v1224 = vmax.f32 %v1193, %v1209
        %v1225 = vmax.f32 %v1195, %v1211
        %v1226 = vmax.f32 %v1197, %v1213
        %v1227 = vmax.f32 %v1199, %v1215
        %v1228 = vmax.f32 %v1201, %v1217
        %v1229 = vmax.f32 %v1203, %v1219
        %v1230 = vmax.f32 %v1205, %v1221
        %v1231 = vmax.f32 %v1207, %v1223
        %v1232 = vld [vmem:[%s2] sm:$0xff]
        %v1233 = vld [vmem:[%s2 + $0x8] sm:$0xff]
        %v1234 = vld [vmem:[%s2 + $0x10] sm:$0xff]
        %v1235 = vld [vmem:[%s2 + $0x18] sm:$0xff]
        %v1236 = vld [vmem:[%s2 + $0x20] sm:$0xff]
        %v1237 = vld [vmem:[%s2 + $0x28] sm:$0xff]
        %v1238 = vld [vmem:[%s2 + $0x30] sm:$0xff]
        %v1239 = vld [vmem:[%s2 + $0x38] sm:$0xff]
        %vm1240 = vcmp.eq.s32.totalorder %v1232, 0
        %vm1241 = vcmp.eq.s32.totalorder %v1233, 0
        %vm1242 = vcmp.eq.s32.totalorder %v1234, 0
        %vm1243 = vcmp.eq.s32.totalorder %v1235, 0
        %vm1244 = vcmp.eq.s32.totalorder %v1236, 0
        %vm1245 = vcmp.eq.s32.totalorder %v1237, 0
        %vm1246 = vcmp.eq.s32.totalorder %v1238, 0
        %vm1247 = vcmp.eq.s32.totalorder %v1239, 0
        %v1248 = vrot.slane %v1224, 7
        %v1249 = vrot.slane %v1225, 7
        %v1250 = vrot.slane %v1226, 7
        %v1251 = vrot.slane %v1227, 7
        %v1252 = vrot.slane %v1228, 7
        %v1253 = vrot.slane %v1229, 7
        %v1254 = vrot.slane %v1230, 7
        %v1255 = vrot.slane %v1231, 7
        %v1256 = vsel %vm534, %v1254, %v1255
        %v1257 = vsel %vm534, %v1253, %v1254
        %v1258 = vsel %vm534, %v1252, %v1253
        %v1259 = vsel %vm534, %v1251, %v1252
        %v1260 = vsel %vm534, %v1250, %v1251
        %v1261 = vsel %vm534, %v1249, %v1250
        %v1262 = vsel %vm534, %v1248, %v1249
        %v1263 = vsel %vm534, %v1255, %v1248
        %v1264 = vsel %vm1240, 1, 0
        %v1265 = vsel %vm1241, 1, 0
        %v1266 = vsel %vm1242, 1, 0
        %v1267 = vsel %vm1243, 1, 0
        %v1268 = vsel %vm1244, 1, 0
        %v1269 = vsel %vm1245, 1, 0
        %v1270 = vsel %vm1246, 1, 0
        %v1271 = vsel %vm1247, 1, 0
        %1272 = vset.pattern.permute.xlu0 0
        %1273 = vperm.xlu0 %1272, %v1264
        %v1274 = vpop.permute.xlu0 %1273
        %1275 = vset.pattern.permute.xlu0 0
        %1276 = vperm.xlu0 %1275, %v1265
        %v1277 = vpop.permute.xlu0 %1276
        %1278 = vset.pattern.permute.xlu0 0
        %1279 = vperm.xlu0 %1278, %v1266
        %v1280 = vpop.permute.xlu0 %1279
        %1281 = vset.pattern.permute.xlu0 0
        %1282 = vperm.xlu0 %1281, %v1267
        %v1283 = vpop.permute.xlu0 %1282
        %1284 = vset.pattern.permute.xlu0 0
        %1285 = vperm.xlu0 %1284, %v1268
        %v1286 = vpop.permute.xlu0 %1285
        %1287 = vset.pattern.permute.xlu0 0
        %1288 = vperm.xlu0 %1287, %v1269
        %v1289 = vpop.permute.xlu0 %1288
        %1290 = vset.pattern.permute.xlu0 0
        %1291 = vperm.xlu0 %1290, %v1270
        %v1292 = vpop.permute.xlu0 %1291
        %1293 = vset.pattern.permute.xlu0 0
        %1294 = vperm.xlu0 %1293, %v1271
        %v1295 = vpop.permute.xlu0 %1294
        %vm1296 = vcmp.eq.s32.totalorder %v1274, 1
        %vm1297 = vcmp.eq.s32.totalorder %v1277, 1
        %vm1298 = vcmp.eq.s32.totalorder %v1280, 1
        %vm1299 = vcmp.eq.s32.totalorder %v1283, 1
        %vm1300 = vcmp.eq.s32.totalorder %v1286, 1
        %vm1301 = vcmp.eq.s32.totalorder %v1289, 1
        %vm1302 = vcmp.eq.s32.totalorder %v1292, 1
        %vm1303 = vcmp.eq.s32.totalorder %v1295, 1
        %v1304 = vsel %vm1296, 0.0, %v1263
        %v1305 = vsel %vm1297, 0.0, %v1262
        %v1306 = vsel %vm1298, 0.0, %v1261
        %v1307 = vsel %vm1299, 0.0, %v1260
        %v1308 = vsel %vm1300, 0.0, %v1259
        %v1309 = vsel %vm1301, 0.0, %v1258
        %v1310 = vsel %vm1302, 0.0, %v1257
        %v1311 = vsel %vm1303, 0.0, %v1256
        %vm1312 = vcmp.eq.s32.totalorder %v1232, 7
        %vm1313 = vcmp.eq.s32.totalorder %v1233, 7
        %vm1314 = vcmp.eq.s32.totalorder %v1234, 7
        %vm1315 = vcmp.eq.s32.totalorder %v1235, 7
        %vm1316 = vcmp.eq.s32.totalorder %v1236, 7
        %vm1317 = vcmp.eq.s32.totalorder %v1237, 7
        %vm1318 = vcmp.eq.s32.totalorder %v1238, 7
        %vm1319 = vcmp.eq.s32.totalorder %v1239, 7
        %v1320 = vrot.slane %v1224, 1
        %v1321 = vrot.slane %v1225, 1
        %v1322 = vrot.slane %v1226, 1
        %v1323 = vrot.slane %v1227, 1
        %v1324 = vrot.slane %v1228, 1
        %v1325 = vrot.slane %v1229, 1
        %v1326 = vrot.slane %v1230, 1
        %v1327 = vrot.slane %v1231, 1
        %v1328 = vsel %vm679, %v1326, %v1327
        %v1329 = vsel %vm679, %v1325, %v1326
        %v1330 = vsel %vm679, %v1324, %v1325
        %v1331 = vsel %vm679, %v1323, %v1324
        %v1332 = vsel %vm679, %v1322, %v1323
        %v1333 = vsel %vm679, %v1321, %v1322
        %v1334 = vsel %vm679, %v1320, %v1321
        %v1335 = vsel %vm679, %v1327, %v1320
        %v1336 = vsel %vm1312, 1, 0
        %v1337 = vsel %vm1313, 1, 0
        %v1338 = vsel %vm1314, 1, 0
        %v1339 = vsel %vm1315, 1, 0
        %v1340 = vsel %vm1316, 1, 0
        %v1341 = vsel %vm1317, 1, 0
        %v1342 = vsel %vm1318, 1, 0
        %v1343 = vsel %vm1319, 1, 0
        %1344 = vset.pattern.permute.xlu0 0
        %1345 = vperm.xlu0 %1344, %v1336
        %v1346 = vpop.permute.xlu0 %1345
        %1347 = vset.pattern.permute.xlu0 0
        %1348 = vperm.xlu0 %1347, %v1337
        %v1349 = vpop.permute.xlu0 %1348
        %1350 = vset.pattern.permute.xlu0 0
        %1351 = vperm.xlu0 %1350, %v1338
        %v1352 = vpop.permute.xlu0 %1351
        %1353 = vset.pattern.permute.xlu0 0
        %1354 = vperm.xlu0 %1353, %v1339
        %v1355 = vpop.permute.xlu0 %1354
        %1356 = vset.pattern.permute.xlu0 0
        %1357 = vperm.xlu0 %1356, %v1340
        %v1358 = vpop.permute.xlu0 %1357
        %1359 = vset.pattern.permute.xlu0 0
        %1360 = vperm.xlu0 %1359, %v1341
        %v1361 = vpop.permute.xlu0 %1360
        %1362 = vset.pattern.permute.xlu0 0
        %1363 = vperm.xlu0 %1362, %v1342
        %v1364 = vpop.permute.xlu0 %1363
        %1365 = vset.pattern.permute.xlu0 0
        %1366 = vperm.xlu0 %1365, %v1343
        %v1367 = vpop.permute.xlu0 %1366
        %vm1368 = vcmp.eq.s32.totalorder %v1346, 1
        %vm1369 = vcmp.eq.s32.totalorder %v1349, 1
        %vm1370 = vcmp.eq.s32.totalorder %v1352, 1
        %vm1371 = vcmp.eq.s32.totalorder %v1355, 1
        %vm1372 = vcmp.eq.s32.totalorder %v1358, 1
        %vm1373 = vcmp.eq.s32.totalorder %v1361, 1
        %vm1374 = vcmp.eq.s32.totalorder %v1364, 1
        %vm1375 = vcmp.eq.s32.totalorder %v1367, 1
        %v1376 = vsel %vm1368, 0.0, %v1334
        %v1377 = vsel %vm1369, 0.0, %v1333
        %v1378 = vsel %vm1370, 0.0, %v1332
        %v1379 = vsel %vm1371, 0.0, %v1331
        %v1380 = vsel %vm1372, 0.0, %v1330
        %v1381 = vsel %vm1373, 0.0, %v1329
        %v1382 = vsel %vm1374, 0.0, %v1328
        %v1383 = vsel %vm1375, 0.0, %v1335
        %1392 = vrot.lane.b32.xlu0 %v1224, 8
        %v1393 = vpop.permute.xlu0 %1392
        %1394 = vrot.lane.b32.xlu0 %v1225, 8
        %v1395 = vpop.permute.xlu0 %1394
        %1396 = vrot.lane.b32.xlu0 %v1226, 8
        %v1397 = vpop.permute.xlu0 %1396
        %1398 = vrot.lane.b32.xlu0 %v1227, 8
        %v1399 = vpop.permute.xlu0 %1398
        %1400 = vrot.lane.b32.xlu0 %v1228, 8
        %v1401 = vpop.permute.xlu0 %1400
        %1402 = vrot.lane.b32.xlu0 %v1229, 8
        %v1403 = vpop.permute.xlu0 %1402
        %1404 = vrot.lane.b32.xlu0 %v1230, 8
        %v1405 = vpop.permute.xlu0 %1404
        %1406 = vrot.lane.b32.xlu0 %v1231, 8
        %v1407 = vpop.permute.xlu0 %1406
        %1424 = vrot.lane.b32.xlu0 %v1376, 16
        %v1425 = vpop.permute.xlu0 %1424
        %1426 = vrot.lane.b32.xlu0 %v1377, 16
        %v1427 = vpop.permute.xlu0 %1426
        %1428 = vrot.lane.b32.xlu0 %v1378, 16
        %v1429 = vpop.permute.xlu0 %1428
        %1430 = vrot.lane.b32.xlu0 %v1379, 16
        %v1431 = vpop.permute.xlu0 %1430
        %1432 = vrot.lane.b32.xlu0 %v1380, 16
        %v1433 = vpop.permute.xlu0 %1432
        %1434 = vrot.lane.b32.xlu0 %v1381, 16
        %v1435 = vpop.permute.xlu0 %1434
        %1436 = vrot.lane.b32.xlu0 %v1382, 16
        %v1437 = vpop.permute.xlu0 %1436
        %1438 = vrot.lane.b32.xlu0 %v1383, 16
        %v1439 = vpop.permute.xlu0 %1438
        %v1448 = vsel %vm937, %v1304, %v1393
        %v1449 = vsel %vm937, %v1305, %v1395
        %v1450 = vsel %vm937, %v1306, %v1397
        %v1451 = vsel %vm937, %v1307, %v1399
        %v1452 = vsel %vm937, %v1308, %v1401
        %v1453 = vsel %vm937, %v1309, %v1403
        %v1454 = vsel %vm937, %v1310, %v1405
        %v1455 = vsel %vm937, %v1311, %v1407
        %vm1456 = vcmask 130048
        %v1457 = vsel %vm1456, %v1448, %v1425
        %v1458 = vsel %vm1456, %v1449, %v1427
        %v1459 = vsel %vm1456, %v1450, %v1429
        %v1460 = vsel %vm1456, %v1451, %v1431
        %v1461 = vsel %vm1456, %v1452, %v1433
        %v1462 = vsel %vm1456, %v1453, %v1435
        %v1463 = vsel %vm1456, %v1454, %v1437
        %v1464 = vsel %vm1456, %v1455, %v1439
        %v1465 = vld [vmem:[%s6] sm:$0xff]
        %v1466 = vld [vmem:[%s6 + $0x8] sm:$0xff]
        %v1467 = vld [vmem:[%s6 + $0x10] sm:$0xff]
        %v1468 = vld [vmem:[%s7] sm:$0x1]
        %v1470 = vlaneseq
        %v1471 = vshrl.u32 %v1470, 7
        %v1472 = vsub.s32 0, %v1471
        %v1473 = vrot.slane %v1468, %v1472
        %vm1475 = vcmask 195584
        %v1477 = vsel %vm1475, %v1457, 0
        %v1480 = vsel %vm1475, %v1458, 0
        %v1483 = vsel %vm1475, %v1459, 0
        %v1486 = vsel %vm1475, %v1460, 0
        %v1489 = vsel %vm1475, %v1461, 0
        %v1492 = vsel %vm1475, %v1462, 0
        %v1495 = vsel %vm1475, %v1463, 0
        %v1498 = vsel %vm1475, %v1464, 0
        %1500 = vmatprep.subr.mxu0 0.0
        %1501 = vmatpush1.msra.mxu0 %v1465
        %1502 = vmatprep.subr.mxu0 0.0
        %1503 = vmatpush1.msra.mxu0 %v1466
        %1504 = vmatprep.subr.mxu0 0.0
        %1505 = vmatpush1.msra.mxu0 %v1467
        %1506 = vmatprep.subr.mxu0 0.0
        %1507 = vmatpush1.msra.mxu0 0.0
        %1508 = vmatprep.subr.mxu0 0.0
        %1509 = vmatpush1.msra.mxu0 0.0
        %1510 = vmatprep.subr.mxu0 0.0
        %1511 = vmatpush1.msra.mxu0 0.0
        %1512 = vmatprep.subr.mxu0 0.0
        %1513 = vmatpush1.msra.mxu0 0.0
        %1514 = vmatprep.subr.mxu0 0.0
        %1515 = vmatpush1.msra.mxu0 0.0
        %1516 = vmatprep.subr.mxu0 0.0
        %1517 = vmatpush1.msra.mxu0 0.0
        %1518 = vmatprep.subr.mxu0 0.0
        %1519 = vmatpush1.msra.mxu0 0.0
        %1520 = vmatprep.subr.mxu0 0.0
        %1521 = vmatpush1.msra.mxu0 0.0
        %1522 = vmatprep.subr.mxu0 0.0
        %1523 = vmatpush1.msra.mxu0 0.0
        %1524 = vmatprep.subr.mxu0 0.0
        %1525 = vmatpush1.msra.mxu0 0.0
        %1526 = vmatprep.subr.mxu0 0.0
        %1527 = vmatpush1.msra.mxu0 0.0
        %1528 = vmatprep.subr.mxu0 0.0
        %1529 = vmatpush1.msra.mxu0 0.0
        %1530 = vmatprep.subr.mxu0 0.0
        %1531 = vmatpush1.msra.mxu0 0.0
        %1532 = vmatprep.subr.mxu0 0.0
        %1533 = vmatpush1.msra.mxu0 0.0
        %1534 = vmatprep.subr.mxu0 0.0
        %1535 = vmatpush1.msra.mxu0 0.0
        %1536 = vmatprep.subr.mxu0 0.0
        %1537 = vmatpush1.msra.mxu0 0.0
        %1538 = vmatprep.subr.mxu0 0.0
        %1539 = vmatpush1.msra.mxu0 0.0
        %1540 = vmatprep.subr.mxu0 0.0
        %1541 = vmatpush1.msra.mxu0 0.0
        %1542 = vmatprep.subr.mxu0 0.0
        %1543 = vmatpush1.msra.mxu0 0.0
        %1544 = vmatprep.subr.mxu0 0.0
        %1545 = vmatpush1.msra.mxu0 0.0
        %1546 = vmatprep.subr.mxu0 0.0
        %1547 = vmatpush1.msra.mxu0 0.0
        %1548 = vmatprep.subr.mxu0 0.0
        %1549 = vmatpush1.msra.mxu0 0.0
        %1550 = vmatprep.subr.mxu0 0.0
        %1551 = vmatpush1.msra.mxu0 0.0
        %1552 = vmatprep.subr.mxu0 0.0
        %1553 = vmatpush1.msra.mxu0 0.0
        %1554 = vmatprep.subr.mxu0 0.0
        %1555 = vmatpush1.msra.mxu0 0.0
        %1556 = vmatprep.subr.mxu0 0.0
        %1557 = vmatpush1.msra.mxu0 0.0
        %1558 = vmatprep.subr.mxu0 0.0
        %1559 = vmatpush1.msra.mxu0 0.0
        %1560 = vmatprep.subr.mxu0 0.0
        %1561 = vmatpush1.msra.mxu0 0.0
        %1562 = vmatprep.subr.mxu0 0.0
        %1563 = vmatpush1.msra.mxu0 0.0
        %1564 = vmatprep.mubr.f32.mxu0 0.0
        %1565 = vmatmul.mubr.f32.gmra.mrb[0].mxu0 %v1477
        %v1566 = vpop.f32.mrb[0].mxu0
        %v1567 = vadd.f32 %v1473, %v1566
        %v1568 = vpop.f32.mrb[0].mxu0
        %1569 = vmatprep.mubr.f32.mxu0 0.0
        %1570 = vmatmul.mubr.f32.gmra.mrb[0].mxu0 %v1480
        %v1571 = vpop.f32.mrb[0].mxu0
        %v1572 = vadd.f32 %v1473, %v1571
        %v1573 = vpop.f32.mrb[0].mxu0
        %1574 = vmatprep.mubr.f32.mxu0 0.0
        %1575 = vmatmul.mubr.f32.gmra.mrb[0].mxu0 %v1483
        %v1576 = vpop.f32.mrb[0].mxu0
        %v1577 = vadd.f32 %v1473, %v1576
        %v1578 = vpop.f32.mrb[0].mxu0
        %1579 = vmatprep.mubr.f32.mxu0 0.0
        %1580 = vmatmul.mubr.f32.gmra.mrb[0].mxu0 %v1486
        %v1581 = vpop.f32.mrb[0].mxu0
        %v1582 = vadd.f32 %v1473, %v1581
        %v1583 = vpop.f32.mrb[0].mxu0
        %1584 = vmatprep.mubr.f32.mxu0 0.0
        %1585 = vmatmul.mubr.f32.gmra.mrb[0].mxu0 %v1489
        %v1586 = vpop.f32.mrb[0].mxu0
        %v1587 = vadd.f32 %v1473, %v1586
        %v1588 = vpop.f32.mrb[0].mxu0
        %1589 = vmatprep.mubr.f32.mxu0 0.0
        %1590 = vmatmul.mubr.f32.gmra.mrb[0].mxu0 %v1492
        %v1591 = vpop.f32.mrb[0].mxu0
        %v1592 = vadd.f32 %v1473, %v1591
        %v1593 = vpop.f32.mrb[0].mxu0
        %1594 = vmatprep.mubr.f32.mxu0 0.0
        %1595 = vmatmul.mubr.f32.gmra.mrb[0].mxu0 %v1495
        %v1596 = vpop.f32.mrb[0].mxu0
        %v1597 = vadd.f32 %v1473, %v1596
        %v1598 = vpop.f32.mrb[0].mxu0
        %1599 = vmatprep.mubr.f32.mxu0 0.0
        %1600 = vmatmul.mubr.f32.gmra.mrb[0].mxu0 %v1498
        %v1601 = vpop.f32.mrb[0].mxu0
        %v1602 = vadd.f32 %v1473, %v1601
        %v1603 = vpop.f32.mrb[0].mxu0
        %1604 = vdwg.mxu0
        %v1605 = vmax.f32 %v1567, 0.0
        %v1606 = vmax.f32 %v1572, 0.0
        %v1607 = vmax.f32 %v1577, 0.0
        %v1608 = vmax.f32 %v1582, 0.0
        %v1609 = vmax.f32 %v1587, 0.0
        %v1610 = vmax.f32 %v1592, 0.0
        %v1611 = vmax.f32 %v1597, 0.0
        %v1612 = vmax.f32 %v1602, 0.0
        %1613 = vst.msk [vmem:[#allocation3] sm:$0xff] %vm1456, %v1605
        %1614 = vst.msk [vmem:[#allocation3 + $0x8] sm:$0xff] %vm1456, %v1606
        %1615 = vst.msk [vmem:[#allocation3 + $0x10] sm:$0xff] %vm1456, %v1607
        %1616 = vst.msk [vmem:[#allocation3 + $0x18] sm:$0xff] %vm1456, %v1608
        %1617 = vst.msk [vmem:[#allocation3 + $0x20] sm:$0xff] %vm1456, %v1609
        %1618 = vst.msk [vmem:[#allocation3 + $0x28] sm:$0xff] %vm1456, %v1610
        %1619 = vst.msk [vmem:[#allocation3 + $0x30] sm:$0xff] %vm1456, %v1611
        %1620 = vst.msk [vmem:[#allocation3 + $0x38] sm:$0xff] %vm1456, %v1612
        %v1621 = vld [vmem:[#allocation3] ss:$2 sm:$0xff]
        %s1622 = scalar_lea.vmem [#allocation3], 16
        %v1623 = vld [vmem:[%s1622] ss:$2 sm:$0xff]
        %s1624 = scalar_lea.vmem [#allocation3], 32
        %v1625 = vld [vmem:[%s1624] ss:$2 sm:$0xff]
        %s1626 = scalar_lea.vmem [#allocation3], 48
        %v1627 = vld [vmem:[%s1626] ss:$2 sm:$0xff]
        %s1628 = scalar_lea.vmem [#allocation3], 1
        %v1629 = vld [vmem:[%s1628] ss:$2 sm:$0xff]
        %s1630 = scalar_lea.vmem [#allocation3], 17
        %v1631 = vld [vmem:[%s1630] ss:$2 sm:$0xff]
        %s1632 = scalar_lea.vmem [#allocation3], 33
        %v1633 = vld [vmem:[%s1632] ss:$2 sm:$0xff]
        %s1634 = scalar_lea.vmem [#allocation3], 49
        %v1635 = vld [vmem:[%s1634] ss:$2 sm:$0xff]
        %v1636 = vmax.f32 %v1621, %v1629
        %v1637 = vmax.f32 %v1623, %v1631
        %v1638 = vmax.f32 %v1625, %v1633
        %v1639 = vmax.f32 %v1627, %v1635
        %v1640 = vld [vmem:[%s3] sm:$0xff]
        %v1641 = vld [vmem:[%s3 + $0x8] sm:$0xff]
        %v1642 = vld [vmem:[%s3 + $0x10] sm:$0xff]
        %v1643 = vld [vmem:[%s3 + $0x18] sm:$0xff]
        %vm1644 = vcmp.eq.s32.totalorder %v1640, 0
        %vm1645 = vcmp.eq.s32.totalorder %v1641, 0
        %vm1646 = vcmp.eq.s32.totalorder %v1642, 0
        %vm1647 = vcmp.eq.s32.totalorder %v1643, 0
        %v1648 = vrot.slane %v1636, 7
        %v1649 = vrot.slane %v1637, 7
        %v1650 = vrot.slane %v1638, 7
        %v1651 = vrot.slane %v1639, 7
        %v1652 = vsel %vm534, %v1650, %v1651
        %v1653 = vsel %vm534, %v1649, %v1650
        %v1654 = vsel %vm534, %v1648, %v1649
        %v1655 = vsel %vm534, %v1651, %v1648
        %v1656 = vsel %vm1644, 1, 0
        %v1657 = vsel %vm1645, 1, 0
        %v1658 = vsel %vm1646, 1, 0
        %v1659 = vsel %vm1647, 1, 0
        %1660 = vset.pattern.permute.xlu0 0
        %1661 = vperm.xlu0 %1660, %v1656
        %v1662 = vpop.permute.xlu0 %1661
        %1663 = vset.pattern.permute.xlu0 0
        %1664 = vperm.xlu0 %1663, %v1657
        %v1665 = vpop.permute.xlu0 %1664
        %1666 = vset.pattern.permute.xlu0 0
        %1667 = vperm.xlu0 %1666, %v1658
        %v1668 = vpop.permute.xlu0 %1667
        %1669 = vset.pattern.permute.xlu0 0
        %1670 = vperm.xlu0 %1669, %v1659
        %v1671 = vpop.permute.xlu0 %1670
        %vm1672 = vcmp.eq.s32.totalorder %v1662, 1
        %vm1673 = vcmp.eq.s32.totalorder %v1665, 1
        %vm1674 = vcmp.eq.s32.totalorder %v1668, 1
        %vm1675 = vcmp.eq.s32.totalorder %v1671, 1
        %v1676 = vsel %vm1672, 0.0, %v1655
        %v1677 = vsel %vm1673, 0.0, %v1654
        %v1678 = vsel %vm1674, 0.0, %v1653
        %v1679 = vsel %vm1675, 0.0, %v1652
        %vm1680 = vcmp.eq.s32.totalorder %v1640, 3
        %vm1681 = vcmp.eq.s32.totalorder %v1641, 3
        %vm1682 = vcmp.eq.s32.totalorder %v1642, 3
        %vm1683 = vcmp.eq.s32.totalorder %v1643, 3
        %v1684 = vrot.slane %v1636, 1
        %v1685 = vrot.slane %v1637, 1
        %v1686 = vrot.slane %v1638, 1
        %v1687 = vrot.slane %v1639, 1
        %v1688 = vsel %vm679, %v1686, %v1687
        %v1689 = vsel %vm679, %v1685, %v1686
        %v1690 = vsel %vm679, %v1684, %v1685
        %v1691 = vsel %vm679, %v1687, %v1684
        %v1692 = vsel %vm1680, 1, 0
        %v1693 = vsel %vm1681, 1, 0
        %v1694 = vsel %vm1682, 1, 0
        %v1695 = vsel %vm1683, 1, 0
        %1696 = vset.pattern.permute.xlu0 0
        %1697 = vperm.xlu0 %1696, %v1692
        %v1698 = vpop.permute.xlu0 %1697
        %1699 = vset.pattern.permute.xlu0 0
        %1700 = vperm.xlu0 %1699, %v1693
        %v1701 = vpop.permute.xlu0 %1700
        %1702 = vset.pattern.permute.xlu0 0
        %1703 = vperm.xlu0 %1702, %v1694
        %v1704 = vpop.permute.xlu0 %1703
        %1705 = vset.pattern.permute.xlu0 0
        %1706 = vperm.xlu0 %1705, %v1695
        %v1707 = vpop.permute.xlu0 %1706
        %vm1708 = vcmp.eq.s32.totalorder %v1698, 1
        %vm1709 = vcmp.eq.s32.totalorder %v1701, 1
        %vm1710 = vcmp.eq.s32.totalorder %v1704, 1
        %vm1711 = vcmp.eq.s32.totalorder %v1707, 1
        %v1712 = vsel %vm1708, 0.0, %v1690
        %v1713 = vsel %vm1709, 0.0, %v1689
        %v1714 = vsel %vm1710, 0.0, %v1688
        %v1715 = vsel %vm1711, 0.0, %v1691
        %1720 = vrot.lane.b32.xlu0 %v1636, 16
        %v1721 = vpop.permute.xlu0 %1720
        %1722 = vrot.lane.b32.xlu0 %v1637, 16
        %v1723 = vpop.permute.xlu0 %1722
        %1724 = vrot.lane.b32.xlu0 %v1638, 16
        %v1725 = vpop.permute.xlu0 %1724
        %1726 = vrot.lane.b32.xlu0 %v1639, 16
        %v1727 = vpop.permute.xlu0 %1726
        %1736 = vrot.lane.b32.xlu0 %v1712, 32
        %v1737 = vpop.permute.xlu0 %1736
        %1738 = vrot.lane.b32.xlu0 %v1713, 32
        %v1739 = vpop.permute.xlu0 %1738
        %1740 = vrot.lane.b32.xlu0 %v1714, 32
        %v1741 = vpop.permute.xlu0 %1740
        %1742 = vrot.lane.b32.xlu0 %v1715, 32
        %v1743 = vpop.permute.xlu0 %1742
        %v1748 = vsel %vm1456, %v1676, %v1721
        %v1749 = vsel %vm1456, %v1677, %v1723
        %v1750 = vsel %vm1456, %v1678, %v1725
        %v1751 = vsel %vm1456, %v1679, %v1727
        %vm1752 = vcmask 261120
        %v1753 = vsel %vm1752, %v1748, %v1737
        %v1754 = vsel %vm1752, %v1749, %v1739
        %v1755 = vsel %vm1752, %v1750, %v1741
        %v1756 = vsel %vm1752, %v1751, %v1743
        %v1757 = vld [vmem:[%s8] sm:$0xff]
        %v1758 = vld [vmem:[%s8 + $0x8] sm:$0xff]
        %v1759 = vld [vmem:[%s8 + $0x10] sm:$0xff]
        %v1760 = vld [vmem:[%s8 + $0x18] sm:$0xff]
        %v1761 = vld [vmem:[%s8 + $0x20] sm:$0xff]
        %v1762 = vld [vmem:[%s8 + $0x28] sm:$0xff]
        %v1763 = vld [vmem:[%s9] sm:$0x1]
        %v1765 = vlaneseq
        %v1766 = vshrl.u32 %v1765, 7
        %v1767 = vsub.s32 0, %v1766
        %v1768 = vrot.slane %v1763, %v1767
        %vm1770 = vcmask 392192
        %v1772 = vsel %vm1770, %v1753, 0
        %v1775 = vsel %vm1770, %v1754, 0
        %v1778 = vsel %vm1770, %v1755, 0
        %v1781 = vsel %vm1770, %v1756, 0
        %1783 = vmatprep.subr.mxu0 0.0
        %1784 = vmatpush1.msra.mxu0 %v1757
        %1785 = vmatprep.subr.mxu0 0.0
        %1786 = vmatpush1.msra.mxu0 %v1758
        %1787 = vmatprep.subr.mxu0 0.0
        %1788 = vmatpush1.msra.mxu0 %v1759
        %1789 = vmatprep.subr.mxu0 0.0
        %1790 = vmatpush1.msra.mxu0 %v1760
        %1791 = vmatprep.subr.mxu0 0.0
        %1792 = vmatpush1.msra.mxu0 %v1761
        %1793 = vmatprep.subr.mxu0 0.0
        %1794 = vmatpush1.msra.mxu0 %v1762
        %1795 = vmatprep.subr.mxu0 0.0
        %1796 = vmatpush1.msra.mxu0 0.0
        %1797 = vmatprep.subr.mxu0 0.0
        %1798 = vmatpush1.msra.mxu0 0.0
        %1799 = vmatprep.subr.mxu0 0.0
        %1800 = vmatpush1.msra.mxu0 0.0
        %1801 = vmatprep.subr.mxu0 0.0
        %1802 = vmatpush1.msra.mxu0 0.0
        %1803 = vmatprep.subr.mxu0 0.0
        %1804 = vmatpush1.msra.mxu0 0.0
        %1805 = vmatprep.subr.mxu0 0.0
        %1806 = vmatpush1.msra.mxu0 0.0
        %1807 = vmatprep.subr.mxu0 0.0
        %1808 = vmatpush1.msra.mxu0 0.0
        %1809 = vmatprep.subr.mxu0 0.0
        %1810 = vmatpush1.msra.mxu0 0.0
        %1811 = vmatprep.subr.mxu0 0.0
        %1812 = vmatpush1.msra.mxu0 0.0
        %1813 = vmatprep.subr.mxu0 0.0
        %1814 = vmatpush1.msra.mxu0 0.0
        %1815 = vmatprep.subr.mxu0 0.0
        %1816 = vmatpush1.msra.mxu0 0.0
        %1817 = vmatprep.subr.mxu0 0.0
        %1818 = vmatpush1.msra.mxu0 0.0
        %1819 = vmatprep.subr.mxu0 0.0
        %1820 = vmatpush1.msra.mxu0 0.0
        %1821 = vmatprep.subr.mxu0 0.0
        %1822 = vmatpush1.msra.mxu0 0.0
        %1823 = vmatprep.subr.mxu0 0.0
        %1824 = vmatpush1.msra.mxu0 0.0
        %1825 = vmatprep.subr.mxu0 0.0
        %1826 = vmatpush1.msra.mxu0 0.0
        %1827 = vmatprep.subr.mxu0 0.0
        %1828 = vmatpush1.msra.mxu0 0.0
        %1829 = vmatprep.subr.mxu0 0.0
        %1830 = vmatpush1.msra.mxu0 0.0
        %1831 = vmatprep.subr.mxu0 0.0
        %1832 = vmatpush1.msra.mxu0 0.0
        %1833 = vmatprep.subr.mxu0 0.0
        %1834 = vmatpush1.msra.mxu0 0.0
        %1835 = vmatprep.subr.mxu0 0.0
        %1836 = vmatpush1.msra.mxu0 0.0
        %1837 = vmatprep.subr.mxu0 0.0
        %1838 = vmatpush1.msra.mxu0 0.0
        %1839 = vmatprep.subr.mxu0 0.0
        %1840 = vmatpush1.msra.mxu0 0.0
        %1841 = vmatprep.subr.mxu0 0.0
        %1842 = vmatpush1.msra.mxu0 0.0
        %1843 = vmatprep.subr.mxu0 0.0
        %1844 = vmatpush1.msra.mxu0 0.0
        %1845 = vmatprep.subr.mxu0 0.0
        %1846 = vmatpush1.msra.mxu0 0.0
        %1847 = vmatprep.mubr.f32.mxu0 0.0
        %1848 = vmatmul.mubr.f32.gmra.mrb[0].mxu0 %v1772
        %v1849 = vpop.f32.mrb[0].mxu0
        %v1850 = vadd.f32 %v1768, %v1849
        %v1851 = vpop.f32.mrb[0].mxu0
        %1852 = vmatprep.mubr.f32.mxu0 0.0
        %1853 = vmatmul.mubr.f32.gmra.mrb[0].mxu0 %v1775
        %v1854 = vpop.f32.mrb[0].mxu0
        %v1855 = vadd.f32 %v1768, %v1854
        %v1856 = vpop.f32.mrb[0].mxu0
        %1857 = vmatprep.mubr.f32.mxu0 0.0
        %1858 = vmatmul.mubr.f32.gmra.mrb[0].mxu0 %v1778
        %v1859 = vpop.f32.mrb[0].mxu0
        %v1860 = vadd.f32 %v1768, %v1859
        %v1861 = vpop.f32.mrb[0].mxu0
        %1862 = vmatprep.mubr.f32.mxu0 0.0
        %1863 = vmatmul.mubr.f32.gmra.mrb[0].mxu0 %v1781
        %v1864 = vpop.f32.mrb[0].mxu0
        %v1865 = vadd.f32 %v1768, %v1864
        %v1866 = vpop.f32.mrb[0].mxu0
        %1867 = vdwg.mxu0
        %v1868 = vmax.f32 %v1850, 0.0
        %v1869 = vmax.f32 %v1855, 0.0
        %v1870 = vmax.f32 %v1860, 0.0
        %v1871 = vmax.f32 %v1865, 0.0
        %1872 = vst.msk [vmem:[#allocation4] sm:$0xff] %vm1752, %v1868
        %1873 = vst.msk [vmem:[#allocation4 + $0x8] sm:$0xff] %vm1752, %v1869
        %1874 = vst.msk [vmem:[#allocation4 + $0x10] sm:$0xff] %vm1752, %v1870
        %1875 = vst.msk [vmem:[#allocation4 + $0x18] sm:$0xff] %vm1752, %v1871
        %v1876 = vld [vmem:[#allocation4] ss:$4 sm:$0xff]
        %s1877 = scalar_lea.vmem [#allocation4], 1
        %v1878 = vld [vmem:[%s1877] ss:$4 sm:$0xff]
        %v1879 = vmax.f32 %v1876, %v1878
        %1880 = vst.msk [vmem:[#allocation5] sm:$0xff] %vm1752, %v1879
        %s1881 = scalar_lea.vmem [#allocation4], 2
        %v1882 = vld [vmem:[%s1881] ss:$4 sm:$0xff]
        %s1883 = scalar_lea.vmem [#allocation4], 3
        %v1884 = vld [vmem:[%s1883] ss:$4 sm:$0xff]
        %v1885 = vmax.f32 %v1882, %v1884
        %1887 = vrot.lane.b32.xlu0 %v1885, 32
        %v1888 = vpop.permute.xlu0 %1887
        %vm1890 = vcmask 523520
        %1891 = vst.msk [vmem:[#allocation5] sm:$0xff] %vm1890, %v1888
        %v1892 = vld [vmem:[#allocation5] sm:$0xff]
        %v1893 = vld [vmem:[%s10] sm:$0xff]
        %v1894 = vld [vmem:[%s10 + $0x8] sm:$0xff]
        %v1895 = vld [vmem:[%s10 + $0x10] sm:$0xff]
        %v1896 = vld [vmem:[%s10 + $0x18] sm:$0xff]
        %v1897 = vld [vmem:[%s10 + $0x20] sm:$0xff]
        %v1898 = vld [vmem:[%s10 + $0x28] sm:$0xff]
        %v1899 = vld [vmem:[%s10 + $0x30] sm:$0xff]
        %v1900 = vld [vmem:[%s10 + $0x38] sm:$0xff]
        %v1901 = vld [vmem:[%s11] sm:$0x1]
        %v1903 = vlaneseq
        %v1904 = vshrl.u32 %v1903, 7
        %v1905 = vsub.s32 0, %v1904
        %v1906 = vrot.slane %v1901, %v1905
        %vm1908 = vcmask 523264
        %v1910 = vsel %vm1908, %v1892, 0
        %1912 = vmatprep.subr.mxu0 0.0
        %1913 = vmatpush1.msra.mxu0 %v1893
        %1914 = vmatprep.subr.mxu0 0.0
        %1915 = vmatpush1.msra.mxu0 %v1894
        %1916 = vmatprep.subr.mxu0 0.0
        %1917 = vmatpush1.msra.mxu0 %v1895
        %1918 = vmatprep.subr.mxu0 0.0
        %1919 = vmatpush1.msra.mxu0 %v1896
        %1920 = vmatprep.subr.mxu0 0.0
        %1921 = vmatpush1.msra.mxu0 %v1897
        %1922 = vmatprep.subr.mxu0 0.0
        %1923 = vmatpush1.msra.mxu0 %v1898
        %1924 = vmatprep.subr.mxu0 0.0
        %1925 = vmatpush1.msra.mxu0 %v1899
        %1926 = vmatprep.subr.mxu0 0.0
        %1927 = vmatpush1.msra.mxu0 %v1900
        %1928 = vmatprep.subr.mxu0 0.0
        %1929 = vmatpush1.msra.mxu0 0.0
        %1930 = vmatprep.subr.mxu0 0.0
        %1931 = vmatpush1.msra.mxu0 0.0
        %1932 = vmatprep.subr.mxu0 0.0
        %1933 = vmatpush1.msra.mxu0 0.0
        %1934 = vmatprep.subr.mxu0 0.0
        %1935 = vmatpush1.msra.mxu0 0.0
        %1936 = vmatprep.subr.mxu0 0.0
        %1937 = vmatpush1.msra.mxu0 0.0
        %1938 = vmatprep.subr.mxu0 0.0
        %1939 = vmatpush1.msra.mxu0 0.0
        %1940 = vmatprep.subr.mxu0 0.0
        %1941 = vmatpush1.msra.mxu0 0.0
        %1942 = vmatprep.subr.mxu0 0.0
        %1943 = vmatpush1.msra.mxu0 0.0
        %1944 = vmatprep.subr.mxu0 0.0
        %1945 = vmatpush1.msra.mxu0 0.0
        %1946 = vmatprep.subr.mxu0 0.0
        %1947 = vmatpush1.msra.mxu0 0.0
        %1948 = vmatprep.subr.mxu0 0.0
        %1949 = vmatpush1.msra.mxu0 0.0
        %1950 = vmatprep.subr.mxu0 0.0
        %1951 = vmatpush1.msra.mxu0 0.0
        %1952 = vmatprep.subr.mxu0 0.0
        %1953 = vmatpush1.msra.mxu0 0.0
        %1954 = vmatprep.subr.mxu0 0.0
        %1955 = vmatpush1.msra.mxu0 0.0
        %1956 = vmatprep.subr.mxu0 0.0
        %1957 = vmatpush1.msra.mxu0 0.0
        %1958 = vmatprep.subr.mxu0 0.0
        %1959 = vmatpush1.msra.mxu0 0.0
        %1960 = vmatprep.subr.mxu0 0.0
        %1961 = vmatpush1.msra.mxu0 0.0
        %1962 = vmatprep.subr.mxu0 0.0
        %1963 = vmatpush1.msra.mxu0 0.0
        %1964 = vmatprep.subr.mxu0 0.0
        %1965 = vmatpush1.msra.mxu0 0.0
        %1966 = vmatprep.subr.mxu0 0.0
        %1967 = vmatpush1.msra.mxu0 0.0
        %1968 = vmatprep.subr.mxu0 0.0
        %1969 = vmatpush1.msra.mxu0 0.0
        %1970 = vmatprep.subr.mxu0 0.0
        %1971 = vmatpush1.msra.mxu0 0.0
        %1972 = vmatprep.subr.mxu0 0.0
        %1973 = vmatpush1.msra.mxu0 0.0
        %1974 = vmatprep.subr.mxu0 0.0
        %1975 = vmatpush1.msra.mxu0 0.0
        %1976 = vmatprep.mubr.f32.mxu0 0.0
        %1977 = vmatmul.mubr.f32.gmra.mrb[0].mxu0 %v1910
        %v1978 = vpop.f32.mrb[0].mxu0
        %v1979 = vadd.f32 %v1906, %v1978
        %v1980 = vpop.f32.mrb[0].mxu0
        %1981 = vdwg.mxu0
        %v1982 = vmax.f32 %v1979, 0.0
        %v1983 = vld [vmem:[%s12] sm:$0xff]
        %v1984 = vld [vmem:[%s12 + $0x8] sm:$0xff]
        %v1985 = vld [vmem:[%s12 + $0x10] sm:$0xff]
        %v1986 = vld [vmem:[%s12 + $0x18] sm:$0xff]
        %v1987 = vld [vmem:[%s13] sm:$0x1]
        %v1989 = vlaneseq
        %v1990 = vshrl.u32 %v1989, 7
        %v1991 = vsub.s32 0, %v1990
        %v1992 = vrot.slane %v1987, %v1991
        %v1995 = vsel %vm1752, %v1982, 0
        %1997 = vmatprep.subr.mxu0 0.0
        %1998 = vmatpush1.msra.mxu0 %v1983
        %1999 = vmatprep.subr.mxu0 0.0
        %2000 = vmatpush1.msra.mxu0 %v1984
        %2001 = vmatprep.subr.mxu0 0.0
        %2002 = vmatpush1.msra.mxu0 %v1985
        %2003 = vmatprep.subr.mxu0 0.0
        %2004 = vmatpush1.msra.mxu0 %v1986
        %2005 = vmatprep.subr.mxu0 0.0
        %2006 = vmatpush1.msra.mxu0 0.0
        %2007 = vmatprep.subr.mxu0 0.0
        %2008 = vmatpush1.msra.mxu0 0.0
        %2009 = vmatprep.subr.mxu0 0.0
        %2010 = vmatpush1.msra.mxu0 0.0
        %2011 = vmatprep.subr.mxu0 0.0
        %2012 = vmatpush1.msra.mxu0 0.0
        %2013 = vmatprep.subr.mxu0 0.0
        %2014 = vmatpush1.msra.mxu0 0.0
        %2015 = vmatprep.subr.mxu0 0.0
        %2016 = vmatpush1.msra.mxu0 0.0
        %2017 = vmatprep.subr.mxu0 0.0
        %2018 = vmatpush1.msra.mxu0 0.0
        %2019 = vmatprep.subr.mxu0 0.0
        %2020 = vmatpush1.msra.mxu0 0.0
        %2021 = vmatprep.subr.mxu0 0.0
        %2022 = vmatpush1.msra.mxu0 0.0
        %2023 = vmatprep.subr.mxu0 0.0
        %2024 = vmatpush1.msra.mxu0 0.0
        %2025 = vmatprep.subr.mxu0 0.0
        %2026 = vmatpush1.msra.mxu0 0.0
        %2027 = vmatprep.subr.mxu0 0.0
        %2028 = vmatpush1.msra.mxu0 0.0
        %2029 = vmatprep.subr.mxu0 0.0
        %2030 = vmatpush1.msra.mxu0 0.0
        %2031 = vmatprep.subr.mxu0 0.0
        %2032 = vmatpush1.msra.mxu0 0.0
        %2033 = vmatprep.subr.mxu0 0.0
        %2034 = vmatpush1.msra.mxu0 0.0
        %2035 = vmatprep.subr.mxu0 0.0
        %2036 = vmatpush1.msra.mxu0 0.0
        %2037 = vmatprep.subr.mxu0 0.0
        %2038 = vmatpush1.msra.mxu0 0.0
        %2039 = vmatprep.subr.mxu0 0.0
        %2040 = vmatpush1.msra.mxu0 0.0
        %2041 = vmatprep.subr.mxu0 0.0
        %2042 = vmatpush1.msra.mxu0 0.0
        %2043 = vmatprep.subr.mxu0 0.0
        %2044 = vmatpush1.msra.mxu0 0.0
        %2045 = vmatprep.subr.mxu0 0.0
        %2046 = vmatpush1.msra.mxu0 0.0
        %2047 = vmatprep.subr.mxu0 0.0
        %2048 = vmatpush1.msra.mxu0 0.0
        %2049 = vmatprep.subr.mxu0 0.0
        %2050 = vmatpush1.msra.mxu0 0.0
        %2051 = vmatprep.subr.mxu0 0.0
        %2052 = vmatpush1.msra.mxu0 0.0
        %2053 = vmatprep.subr.mxu0 0.0
        %2054 = vmatpush1.msra.mxu0 0.0
        %2055 = vmatprep.subr.mxu0 0.0
        %2056 = vmatpush1.msra.mxu0 0.0
        %2057 = vmatprep.subr.mxu0 0.0
        %2058 = vmatpush1.msra.mxu0 0.0
        %2059 = vmatprep.subr.mxu0 0.0
        %2060 = vmatpush1.msra.mxu0 0.0
        %2061 = vmatprep.mubr.f32.mxu0 0.0
        %2062 = vmatmul.mubr.f32.gmra.mrb[0].mxu0 %v1995
        %v2063 = vpop.f32.mrb[0].mxu0
        %v2064 = vadd.f32 %v1992, %v2063
        %v2065 = vpop.f32.mrb[0].mxu0
        %2066 = vdwg.mxu0
        %2067 = vst [vmem:[%s461] sm:$0xff] %v2064
        %s2068 = sand.u32 %s335, 1
        %s2069 = scalar_lea.sflag [#allocation7], %s2068
        %s2070 = sand.u32 %s335, 1
        %s2071 = smul.addr %s2070, 8
        %s2072 = scalar_lea.vmem [#allocation6], %s2071
        // Predicated region
        $region77: #{tpu_custom_call.1} parent=75 // pred_check
          %p2073 = pneg %p345
        $region78: #{tpu_custom_call.1} parent=75 // pred_check_branch
          %2075 = sbr.rel (%p2073) target = $region80
        $region79: #{tpu_custom_call.1} parent=75 // pred_region
          %s2077 = ssub.s32 128, 128
          %2078 = vsyncadd %s2069, %s2077
          %s2079 = smul.addr %s28, 128
          %s2080 = scalar_lea.hbm %s14, %s2079
          %s2082 = sshll.u32 %s2072, 4
          %s2083 = int_to_ptr.vmem [resolvable:$true] %s2082
          %2085 = dma.vmem_to_hbm [thread:$0]  %s2083, 128, %s2080, %s2069
        $region80: #{tpu_custom_call.1} parent=75 // pred_fallthru
          _
      $region76: #{tpu_custom_call.1} parent=5 // pred_fallthru
        _
      %p2086 = scmp.le.s32.totalorder 2, %s23
      // Predicated region
      $region81: #{tpu_custom_call.1} parent=5 // pred_check
        %p2087 = pneg %p2086
      $region82: #{tpu_custom_call.1} parent=5 // pred_check_branch
        %2089 = sbr.rel (%p2087) target = $region84
      $region83: #{tpu_custom_call.1} parent=5 // pred_region
        %s2090 = ssub.s32 %s23, 2
        // Predicated region
        $region85: #{tpu_custom_call.1} parent=83 // pred_check
          %p2091 = pneg %p351
        $region86: #{tpu_custom_call.1} parent=83 // pred_check_branch
          %2093 = sbr.rel (%p2091) target = $region88
        $region87: #{tpu_custom_call.1} parent=83 // pred_region
          %s2094 = sand.u32 %s336, 1
          %s2095 = scalar_lea.sflag [#allocation7], %s2094
          %s2096 = sand.u32 %s336, 1
          %s2097 = smul.addr %s2096, 8
          %s2098 = scalar_lea.vmem [#allocation6], %s2097
          %2099 = dma.done %s2095, 128
        $region88: #{tpu_custom_call.1} parent=83 // pred_fallthru
          _
      $region84: #{tpu_custom_call.1} parent=5 // pred_fallthru
        _
    $region6: #{tpu_custom_call.1} parent=1 // loop_footer
      %s27 = sadd.s32 1, %s23
    $region7: #{tpu_custom_call.1} parent=1 // loop_footer_branch
      %22 = sbr.rel target = $region3
    $region8: #{tpu_custom_call.1} parent=1 // loop_exit
      _
    %2100 = vsyncpa [#allocation7], 1
    %s2101 = scalar_lea.sflag [#allocation7], 1
    %2102 = vsyncpa %s2101, 1

</llo_original>
